<compile_context>
chip_gen: v6e
topology: v6e:2x2x1
jax: 0.10.0
libtpu: 0.0.40
codegen_flags: <defaults>
</compile_context>

<pallas_src>
import jax
import jax.numpy as jnp
import numpy as np
from jax.experimental import pallas as pl
from jax.experimental.pallas import tpu as pltpu


def _ldasubmean_kernel(a_ref, b_ref, wlda_ref, blda_ref, wwccn_ref, bwccn_ref,
                       wpv_ref, wm_ref, b1_ref, w2_ref, b2_ref, out_ref):
    D = wlda_ref.shape[1]
    Mp = b1_ref.shape[1]
    BT = a_ref.shape[0]
    cd = wlda_ref.dtype                      # MXU operand dtype (f32 or bf16)

    # ---- shared-weight embedding: a|b stacked along sublanes, each weight pushed once ----
    x = jnp.concatenate([a_ref[...], b_ref[...]], axis=0)              # (2*BT, IN)
    y = jnp.dot(x.astype(cd), wlda_ref[...],
                preferred_element_type=jnp.float32) + blda_ref[...]    # lda (mean folded in bias)
    ss = jnp.sum(y * y, axis=-1, keepdims=True)
    # y / max(||y||, 1e-12)  ==  y * rsqrt(max(||y||^2, 1e-24))   (EUP rsqrt, no divide)
    y = y * jax.lax.rsqrt(jnp.maximum(ss, 1e-24))
    e = jnp.dot(y.astype(cd), wwccn_ref[...],
                preferred_element_type=jnp.float32) + bwccn_ref[...]   # (2*BT, D)

    A = e[:BT]
    B = e[BT:]
    S = A + B            # sum embedding
    Dm = A - B           # difference embedding

    # ---- refolded fc1 ----
    # vec(A⊗B+B⊗A) = (S⊗S − Dm⊗Dm)/2 ; vec(A⊗A+B⊗B) = (S⊗S + Dm⊗Dm)/2
    # wpv = [Wp | w_vec]: the "a+b" block rides in the same lane-dense MXU pass.
    RS = jnp.dot(S.astype(cd), wpv_ref[...],
                 preferred_element_type=jnp.float32)                   # (BT, (D+1)*Mp)
    RD = jnp.dot(Dm.astype(cd), wm_ref[...],
                 preferred_element_type=jnp.float32)                   # (BT, D*Mp)

    h = RS[:, D * Mp:] + b1_ref[...]                                    # the "a+b" block + bias
    # Weighted reduce over j with lane-aligned static slices — no lanes→sublanes
    # relayout (D is static at trace time, so this loop fully unrolls).
    for j in range(D):
        h = h + (S[:, j:j + 1] * RS[:, j * Mp:(j + 1) * Mp]
                 + Dm[:, j:j + 1] * RD[:, j * Mp:(j + 1) * Mp])
    h = jnp.maximum(h, 0.0)                                             # ReLU
    # TODO(synk): nn.Dropout is identity at inference; training-mode dropout not implemented.
    out_ref[...] = jnp.sum(h * w2_ref[...], axis=-1, keepdims=True) + b2_ref[...]


def ldasubmean_forward(a, b, params, *, block_b=None, weights_dtype=jnp.float32):
    (mean, w_lda, b_lda, w_wccn, b_wccn, w1, b1, w2, b2) = params
    a = jnp.asarray(a, jnp.float32)
    b = jnp.asarray(b, jnp.float32)
    Bsz, IN = a.shape
    D = w_lda.shape[0]
    M, F = w1.shape
    assert F == 2 * D * D + D
    wd = jnp.dtype(weights_dtype)

    # ---- host-side algebraic folds / weight restructuring (trace-time only) ----
    # lda(x - mean) = x @ W^T + (b - mean @ W^T)
    w_lda = jnp.asarray(w_lda, jnp.float32)
    b_lda_eff = (jnp.asarray(b_lda, jnp.float32)
                 - jnp.asarray(mean, jnp.float32) @ w_lda.T).reshape(1, D)

    # Pad mid_feature to a multiple of 128 lanes. Extra rows have zero weight &
    # bias (relu(0)=0) and zero w2 columns, so the result is unchanged.
    Mp = ((M + 127) // 128) * 128
    w1p = jnp.zeros((Mp, F), jnp.float32).at[:M].set(jnp.asarray(w1, jnp.float32))
    b1p = jnp.zeros((1, Mp), jnp.float32).at[:, :M].set(
        jnp.asarray(b1, jnp.float32).reshape(1, M))
    w2p = jnp.zeros((1, Mp), jnp.float32).at[:, :M].set(
        jnp.asarray(w2, jnp.float32).reshape(1, M))

    # S/D refold of the outer-product blocks:
    #   Wd[m,i,j] = w1[m, i*D+j]        (dif block)
    #   Ws[m,i,j] = w1[m, D*D + i*D+j]  (sam block)
    #   Wp = (Wd+Ws)/2 consumed with S⊗S ; Wm = (Ws−Wd)/2 consumed with Dm⊗Dm.
    Wd_t = jnp.transpose(w1p[:, :D * D].reshape(Mp, D, D), (1, 2, 0))          # (D, D, Mp)
    Ws_t = jnp.transpose(w1p[:, D * D:2 * D * D].reshape(Mp, D, D), (1, 2, 0))  # (D, D, Mp)
    Wp_r = ((Wd_t + Ws_t) * 0.5).reshape(D, D * Mp)
    Wm_r = ((Ws_t - Wd_t) * 0.5).reshape(D, D * Mp)
    w_vec = w1p[:, 2 * D * D:].T                                                # (D, Mp)
    wpv = jnp.concatenate([Wp_r, w_vec], axis=1)                                # (D, (D+1)*Mp)

    # ---- batch tiling / padding ----
    if block_b is None:
        # One big tile for small batches: the grid is a serial loop on a single
        # TensorCore (v5e/v6e). On v7x, pass block_b explicitly so the grid
        # length is even and both TensorCores split the batch.
        block_b = min(256, ((Bsz + 7) // 8) * 8)
    block_b = max(8, (block_b // 8) * 8)
    Bp = ((Bsz + block_b - 1) // block_b) * block_b
    if Bp != Bsz:
        a = jnp.zeros((Bp, IN), jnp.float32).at[:Bsz].set(a)
        b = jnp.zeros((Bp, IN), jnp.float32).at[:Bsz].set(b)

    args = (
        a, b,
        w_lda.T.astype(wd),                                    # (IN, D)
        b_lda_eff,                                             # (1, D) f32
        jnp.asarray(w_wccn, jnp.float32).T.astype(wd),         # (D, D)
        jnp.asarray(b_wccn, jnp.float32).reshape(1, D),        # (1, D) f32
        wpv.astype(wd),                                        # (D, (D+1)*Mp)
        Wm_r.astype(wd),                                       # (D, D*Mp)
        b1p, w2p,                                              # (1, Mp) f32
        jnp.asarray(b2, jnp.float32).reshape(1, 1),            # (1, 1)
    )

    def const(shape):
        return pl.BlockSpec(shape, lambda i, _s=shape: tuple(0 for _ in _s))

    in_specs = [
        pl.BlockSpec((block_b, IN), lambda i: (i, 0)),         # a (batch tiled)
        pl.BlockSpec((block_b, IN), lambda i: (i, 0)),         # b (batch tiled)
        const((IN, D)), const((1, D)),                         # lda
        const((D, D)), const((1, D)),                          # wccn
        const((D, (D + 1) * Mp)),                              # [Wp | w_vec]
        const((D, D * Mp)),                                    # Wm
        const((1, Mp)),                                        # b1
        const((1, Mp)),                                        # w2 row
        const((1, 1)),                                         # b2
    ]
    out_spec = pl.BlockSpec((block_b, 1), lambda i: (i, 0))

    # Explicit scoped-VMEM budget (default is only 16 MiB on v5e / 32 MiB on
    # v6e+v7x); keep below v7x's 64 MiB physical VMEM.
    weight_bytes = sum(int(x.size) * x.dtype.itemsize for x in args[2:])
    tile_bytes = 2 * block_b * IN * 4 + block_b * 4
    inter_bytes = 2 * block_b * ((D + 1) * Mp + D * Mp) * 4
    vmem_limit = int(min(max(2 * (weight_bytes + tile_bytes) + 2 * inter_bytes + (8 << 20),
                             16 << 20), 48 << 20))

    out = pl.pallas_call(
        _ldasubmean_kernel,
        out_shape=jax.ShapeDtypeStruct((Bp, 1), jnp.float32),
        grid_spec=pltpu.PrefetchScalarGridSpec(
            num_scalar_prefetch=0,
            grid=(Bp // block_b,),
            in_specs=in_specs,
            out_specs=out_spec,
        ),
        compiler_params=pltpu.CompilerParams(
            dimension_semantics=("parallel",),                 # v7x: both TCs split the batch
            vmem_limit_bytes=vmem_limit),
    )(*args)
    return out[:Bsz]


if __name__ == "__main__":
    key = jax.random.PRNGKey(0)
    Bsz, IN, D, M = 18, 32, 16, 100     # batch, input dim, lda out dim, mid_feature
    ks = jax.random.split(key, 10)

    # Deterministic synthetic "kaldi" parameters (no checkpoint loading).
    kaldi_lda = jax.random.normal(ks[0], (D, IN + 1), jnp.float32) * 0.1   # last col = bias
    kaldi_mean = jax.random.normal(ks[1], (IN,), jnp.float32) * 0.1
    diag_T = jax.random.normal(ks[2], (D, D), jnp.float32) * 0.2           # plda diagonalizing_transform
    plda_mean = jax.random.normal(ks[3], (D,), jnp.float32) * 0.1

    w_lda = kaldi_lda[:, :-1]
    b_lda = kaldi_lda[:, -1]
    w_wccn = diag_T
    b_wccn = -diag_T @ plda_mean

    F = 2 * D * D + D
    w1 = jax.random.normal(ks[4], (M, F), jnp.float32) * (2.0 / F) ** 0.5  # ~kaiming
    b1 = jax.random.normal(ks[5], (M,), jnp.float32) * 0.01
    w2 = jax.random.normal(ks[6], (1, M), jnp.float32) * (2.0 / M) ** 0.5
    b2 = jax.random.normal(ks[7], (1,), jnp.float32) * 0.01

    a = jax.random.normal(ks[8], (Bsz, IN), jnp.float32)
    b = jax.random.normal(ks[9], (Bsz, IN), jnp.float32)

    params = (kaldi_mean, w_lda, b_lda, w_wccn, b_wccn, w1, b1, w2, b2)

    # Pure-JAX reference for verification.
    def ref(a, b):
        def emb(x):
            x = x - kaldi_mean
            y = x @ w_lda.T + b_lda
            y = y / jnp.maximum(jnp.linalg.norm(y, axis=1, keepdims=True), 1e-12)
            return y @ w_wccn.T + b_wccn
        A = emb(a)
        Bv = emb(b)
        dif = A[:, :, None] * Bv[:, None, :] + Bv[:, :, None] * A[:, None, :]
        sam = A[:, :, None] * A[:, None, :] + Bv[:, :, None] * Bv[:, None, :]
        tmp = jnp.concatenate(
            [dif.reshape(Bsz, -1), sam.reshape(Bsz, -1), A + Bv], axis=1)
        h = jnp.maximum(tmp @ w1.T + b1, 0.0)
        return h @ w2.T + b2

    expected = jax.block_until_ready(ref(a, b))

    # f32 path, single batch tile (18 -> pad 24, grid=1): tight tolerance.
    out = jax.block_until_ready(ldasubmean_forward(a, b, params))
    np.testing.assert_allclose(np.asarray(out), np.asarray(expected),
                               rtol=2e-3, atol=2e-3)

    # bf16 MXU operands + even grid (block_b=16 -> pad 32, grid=2, v7x-friendly):
    # f32 accumulation, looser tolerance for the bf16 products.
    out_bf16 = jax.block_until_ready(
        ldasubmean_forward(a, b, params, block_b=16, weights_dtype=jnp.bfloat16))
    np.testing.assert_allclose(np.asarray(out_bf16), np.asarray(expected),
                               rtol=2e-2, atol=2e-2)

    print("KERNEL_OK")
</pallas_src>

<mosaic_0001>
module attributes {stable_mosaic.version = 11 : i64} {
  func.func @_ldasubmean_kernel(%arg0: i32, %arg1: memref<24x32xf32, #tpu.memory_space<vmem>>, %arg2: memref<24x32xf32, #tpu.memory_space<vmem>>, %arg3: memref<32x16xf32, #tpu.memory_space<vmem>>, %arg4: memref<1x16xf32, #tpu.memory_space<vmem>>, %arg5: memref<16x16xf32, #tpu.memory_space<vmem>>, %arg6: memref<1x16xf32, #tpu.memory_space<vmem>>, %arg7: memref<16x2176xf32, #tpu.memory_space<vmem>>, %arg8: memref<16x2048xf32, #tpu.memory_space<vmem>>, %arg9: memref<1x128xf32, #tpu.memory_space<vmem>>, %arg10: memref<1x128xf32, #tpu.memory_space<vmem>>, %arg11: memref<1x1xf32, #tpu.memory_space<vmem>>, %arg12: memref<24x1xf32, #tpu.memory_space<vmem>>) attributes {dimension_semantics = [#tpu.dimension_semantics<parallel>], iteration_bounds = array<i64: 1>, scalar_prefetch = 0 : i64, scratch_operands = 0 : i64, tpu.core_type = #tpu.core_type<tc>, window_params = [{transform_indices = @transform_0, window_bounds = array<i64: 24, 32>}, {transform_indices = @transform_1, window_bounds = array<i64: 24, 32>}, {pipeline_mode = #tpu.pipeline_mode<synchronous>, transform_indices = @transform_2, window_bounds = array<i64: 32, 16>}, {pipeline_mode = #tpu.pipeline_mode<synchronous>, transform_indices = @transform_3, window_bounds = array<i64: 1, 16>}, {pipeline_mode = #tpu.pipeline_mode<synchronous>, transform_indices = @transform_4, window_bounds = array<i64: 16, 16>}, {pipeline_mode = #tpu.pipeline_mode<synchronous>, transform_indices = @transform_5, window_bounds = array<i64: 1, 16>}, {pipeline_mode = #tpu.pipeline_mode<synchronous>, transform_indices = @transform_6, window_bounds = array<i64: 16, 2176>}, {pipeline_mode = #tpu.pipeline_mode<synchronous>, transform_indices = @transform_7, window_bounds = array<i64: 16, 2048>}, {pipeline_mode = #tpu.pipeline_mode<synchronous>, transform_indices = @transform_8, window_bounds = array<i64: 1, 128>}, {pipeline_mode = #tpu.pipeline_mode<synchronous>, transform_indices = @transform_9, window_bounds = array<i64: 1, 128>}, {pipeline_mode = #tpu.pipeline_mode<synchronous>, transform_indices = @transform_10, window_bounds = array<i64: 1, 1>}, {transform_indices = @transform_11, window_bounds = array<i64: 24, 1>}]} {
    %c0 = arith.constant 0 : index
    %c0_0 = arith.constant 0 : index
    %0 = vector.load %arg1[%c0, %c0_0] : memref<24x32xf32, #tpu.memory_space<vmem>>, vector<24x32xf32>
    %c0_1 = arith.constant 0 : index
    %c0_2 = arith.constant 0 : index
    %1 = vector.load %arg2[%c0_1, %c0_2] : memref<24x32xf32, #tpu.memory_space<vmem>>, vector<24x32xf32>
    %2 = tpu.concatenate %0, %1 in 0 : vector<24x32xf32>, vector<24x32xf32> -> vector<48x32xf32>
    %c0_3 = arith.constant 0 : index
    %c0_4 = arith.constant 0 : index
    %3 = vector.load %arg3[%c0_3, %c0_4] : memref<32x16xf32, #tpu.memory_space<vmem>>, vector<32x16xf32>
    %cst = arith.constant dense<0.000000e+00> : vector<48x16xf32>
    %4 = tpu.matmul %2, %3, %cst {dimension_numbers = #tpu.dot_dimension_numbers<[1], [0], [0], [1], [0, 0, 1, 1], [], []>} : vector<48x32xf32>, vector<32x16xf32>, vector<48x16xf32> -> vector<48x16xf32>
    %c0_5 = arith.constant 0 : index
    %c0_6 = arith.constant 0 : index
    %5 = vector.load %arg4[%c0_5, %c0_6] : memref<1x16xf32, #tpu.memory_space<vmem>>, vector<1x16xf32>
    %6 = vector.broadcast %5 : vector<1x16xf32> to vector<48x16xf32>
    %7 = arith.addf %4, %6 : vector<48x16xf32>
    %8 = arith.mulf %7, %7 : vector<48x16xf32>
    %cst_7 = arith.constant dense<0.000000e+00> : vector<48xf32>
    %9 = vector.multi_reduction <add>, %8, %cst_7 [1] : vector<48x16xf32> to vector<48xf32>
    %10 = vector.shape_cast %9 : vector<48xf32> to vector<48x1xf32>
    %cst_8 = arith.constant 1.000000e-24 : f32
    %11 = vector.broadcast %cst_8 : f32 to vector<48x1xf32>
    %12 = arith.maximumf %10, %11 : vector<48x1xf32>
    %13 = math.rsqrt %12 : vector<48x1xf32>
    %14 = vector.broadcast %13 : vector<48x1xf32> to vector<48x16xf32>
    %15 = arith.mulf %7, %14 : vector<48x16xf32>
    %c0_9 = arith.constant 0 : index
    %c0_10 = arith.constant 0 : index
    %16 = vector.load %arg5[%c0_9, %c0_10] : memref<16x16xf32, #tpu.memory_space<vmem>>, vector<16x16xf32>
    %cst_11 = arith.constant dense<0.000000e+00> : vector<48x16xf32>
    %17 = tpu.matmul %15, %16, %cst_11 {dimension_numbers = #tpu.dot_dimension_numbers<[1], [0], [0], [1], [0, 0, 1, 1], [], []>} : vector<48x16xf32>, vector<16x16xf32>, vector<48x16xf32> -> vector<48x16xf32>
    %c0_12 = arith.constant 0 : index
    %c0_13 = arith.constant 0 : index
    %18 = vector.load %arg6[%c0_12, %c0_13] : memref<1x16xf32, #tpu.memory_space<vmem>>, vector<1x16xf32>
    %19 = vector.broadcast %18 : vector<1x16xf32> to vector<48x16xf32>
    %20 = arith.addf %17, %19 : vector<48x16xf32>
    %21 = vector.extract_strided_slice %20 {offsets = [0, 0], sizes = [24, 16], strides = [1, 1]} : vector<48x16xf32> to vector<24x16xf32>
    %22 = vector.extract_strided_slice %20 {offsets = [24, 0], sizes = [24, 16], strides = [1, 1]} : vector<48x16xf32> to vector<24x16xf32>
    %23 = arith.addf %21, %22 : vector<24x16xf32>
    %24 = arith.subf %21, %22 : vector<24x16xf32>
    %c0_14 = arith.constant 0 : index
    %c0_15 = arith.constant 0 : index
    %25 = vector.load %arg7[%c0_14, %c0_15] : memref<16x2176xf32, #tpu.memory_space<vmem>>, vector<16x2176xf32>
    %cst_16 = arith.constant dense<0.000000e+00> : vector<24x2176xf32>
    %26 = tpu.matmul %23, %25, %cst_16 {dimension_numbers = #tpu.dot_dimension_numbers<[1], [0], [0], [1], [0, 0, 1, 1], [], []>} : vector<24x16xf32>, vector<16x2176xf32>, vector<24x2176xf32> -> vector<24x2176xf32>
    %c0_17 = arith.constant 0 : index
    %c0_18 = arith.constant 0 : index
    %27 = vector.load %arg8[%c0_17, %c0_18] : memref<16x2048xf32, #tpu.memory_space<vmem>>, vector<16x2048xf32>
    %cst_19 = arith.constant dense<0.000000e+00> : vector<24x2048xf32>
    %28 = tpu.matmul %24, %27, %cst_19 {dimension_numbers = #tpu.dot_dimension_numbers<[1], [0], [0], [1], [0, 0, 1, 1], [], []>} : vector<24x16xf32>, vector<16x2048xf32>, vector<24x2048xf32> -> vector<24x2048xf32>
    %29 = vector.extract_strided_slice %26 {offsets = [0, 2048], sizes = [24, 128], strides = [1, 1]} : vector<24x2176xf32> to vector<24x128xf32>
    %c0_20 = arith.constant 0 : index
    %c0_21 = arith.constant 0 : index
    %30 = vector.load %arg9[%c0_20, %c0_21] : memref<1x128xf32, #tpu.memory_space<vmem>>, vector<1x128xf32>
    %31 = vector.broadcast %30 : vector<1x128xf32> to vector<24x128xf32>
    %32 = arith.addf %29, %31 : vector<24x128xf32>
    %33 = vector.extract_strided_slice %23 {offsets = [0, 0], sizes = [24, 1], strides = [1, 1]} : vector<24x16xf32> to vector<24x1xf32>
    %34 = vector.extract_strided_slice %26 {offsets = [0, 0], sizes = [24, 128], strides = [1, 1]} : vector<24x2176xf32> to vector<24x128xf32>
    %35 = vector.broadcast %33 : vector<24x1xf32> to vector<24x128xf32>
    %36 = arith.mulf %35, %34 : vector<24x128xf32>
    %37 = vector.extract_strided_slice %24 {offsets = [0, 0], sizes = [24, 1], strides = [1, 1]} : vector<24x16xf32> to vector<24x1xf32>
    %38 = vector.extract_strided_slice %28 {offsets = [0, 0], sizes = [24, 128], strides = [1, 1]} : vector<24x2048xf32> to vector<24x128xf32>
    %39 = vector.broadcast %37 : vector<24x1xf32> to vector<24x128xf32>
    %40 = arith.mulf %39, %38 : vector<24x128xf32>
    %41 = arith.addf %36, %40 : vector<24x128xf32>
    %42 = arith.addf %32, %41 : vector<24x128xf32>
    %43 = vector.extract_strided_slice %23 {offsets = [0, 1], sizes = [24, 1], strides = [1, 1]} : vector<24x16xf32> to vector<24x1xf32>
    %44 = vector.extract_strided_slice %26 {offsets = [0, 128], sizes = [24, 128], strides = [1, 1]} : vector<24x2176xf32> to vector<24x128xf32>
    %45 = vector.broadcast %43 : vector<24x1xf32> to vector<24x128xf32>
    %46 = arith.mulf %45, %44 : vector<24x128xf32>
    %47 = vector.extract_strided_slice %24 {offsets = [0, 1], sizes = [24, 1], strides = [1, 1]} : vector<24x16xf32> to vector<24x1xf32>
    %48 = vector.extract_strided_slice %28 {offsets = [0, 128], sizes = [24, 128], strides = [1, 1]} : vector<24x2048xf32> to vector<24x128xf32>
    %49 = vector.broadcast %47 : vector<24x1xf32> to vector<24x128xf32>
    %50 = arith.mulf %49, %48 : vector<24x128xf32>
    %51 = arith.addf %46, %50 : vector<24x128xf32>
    %52 = arith.addf %42, %51 : vector<24x128xf32>
    %53 = vector.extract_strided_slice %23 {offsets = [0, 2], sizes = [24, 1], strides = [1, 1]} : vector<24x16xf32> to vector<24x1xf32>
    %54 = vector.extract_strided_slice %26 {offsets = [0, 256], sizes = [24, 128], strides = [1, 1]} : vector<24x2176xf32> to vector<24x128xf32>
    %55 = vector.broadcast %53 : vector<24x1xf32> to vector<24x128xf32>
    %56 = arith.mulf %55, %54 : vector<24x128xf32>
    %57 = vector.extract_strided_slice %24 {offsets = [0, 2], sizes = [24, 1], strides = [1, 1]} : vector<24x16xf32> to vector<24x1xf32>
    %58 = vector.extract_strided_slice %28 {offsets = [0, 256], sizes = [24, 128], strides = [1, 1]} : vector<24x2048xf32> to vector<24x128xf32>
    %59 = vector.broadcast %57 : vector<24x1xf32> to vector<24x128xf32>
    %60 = arith.mulf %59, %58 : vector<24x128xf32>
    %61 = arith.addf %56, %60 : vector<24x128xf32>
    %62 = arith.addf %52, %61 : vector<24x128xf32>
    %63 = vector.extract_strided_slice %23 {offsets = [0, 3], sizes = [24, 1], strides = [1, 1]} : vector<24x16xf32> to vector<24x1xf32>
    %64 = vector.extract_strided_slice %26 {offsets = [0, 384], sizes = [24, 128], strides = [1, 1]} : vector<24x2176xf32> to vector<24x128xf32>
    %65 = vector.broadcast %63 : vector<24x1xf32> to vector<24x128xf32>
    %66 = arith.mulf %65, %64 : vector<24x128xf32>
    %67 = vector.extract_strided_slice %24 {offsets = [0, 3], sizes = [24, 1], strides = [1, 1]} : vector<24x16xf32> to vector<24x1xf32>
    %68 = vector.extract_strided_slice %28 {offsets = [0, 384], sizes = [24, 128], strides = [1, 1]} : vector<24x2048xf32> to vector<24x128xf32>
    %69 = vector.broadcast %67 : vector<24x1xf32> to vector<24x128xf32>
    %70 = arith.mulf %69, %68 : vector<24x128xf32>
    %71 = arith.addf %66, %70 : vector<24x128xf32>
    %72 = arith.addf %62, %71 : vector<24x128xf32>
    %73 = vector.extract_strided_slice %23 {offsets = [0, 4], sizes = [24, 1], strides = [1, 1]} : vector<24x16xf32> to vector<24x1xf32>
    %74 = vector.extract_strided_slice %26 {offsets = [0, 512], sizes = [24, 128], strides = [1, 1]} : vector<24x2176xf32> to vector<24x128xf32>
    %75 = vector.broadcast %73 : vector<24x1xf32> to vector<24x128xf32>
    %76 = arith.mulf %75, %74 : vector<24x128xf32>
    %77 = vector.extract_strided_slice %24 {offsets = [0, 4], sizes = [24, 1], strides = [1, 1]} : vector<24x16xf32> to vector<24x1xf32>
    %78 = vector.extract_strided_slice %28 {offsets = [0, 512], sizes = [24, 128], strides = [1, 1]} : vector<24x2048xf32> to vector<24x128xf32>
    %79 = vector.broadcast %77 : vector<24x1xf32> to vector<24x128xf32>
    %80 = arith.mulf %79, %78 : vector<24x128xf32>
    %81 = arith.addf %76, %80 : vector<24x128xf32>
    %82 = arith.addf %72, %81 : vector<24x128xf32>
    %83 = vector.extract_strided_slice %23 {offsets = [0, 5], sizes = [24, 1], strides = [1, 1]} : vector<24x16xf32> to vector<24x1xf32>
    %84 = vector.extract_strided_slice %26 {offsets = [0, 640], sizes = [24, 128], strides = [1, 1]} : vector<24x2176xf32> to vector<24x128xf32>
    %85 = vector.broadcast %83 : vector<24x1xf32> to vector<24x128xf32>
    %86 = arith.mulf %85, %84 : vector<24x128xf32>
    %87 = vector.extract_strided_slice %24 {offsets = [0, 5], sizes = [24, 1], strides = [1, 1]} : vector<24x16xf32> to vector<24x1xf32>
    %88 = vector.extract_strided_slice %28 {offsets = [0, 640], sizes = [24, 128], strides = [1, 1]} : vector<24x2048xf32> to vector<24x128xf32>
    %89 = vector.broadcast %87 : vector<24x1xf32> to vector<24x128xf32>
    %90 = arith.mulf %89, %88 : vector<24x128xf32>
    %91 = arith.addf %86, %90 : vector<24x128xf32>
    %92 = arith.addf %82, %91 : vector<24x128xf32>
    %93 = vector.extract_strided_slice %23 {offsets = [0, 6], sizes = [24, 1], strides = [1, 1]} : vector<24x16xf32> to vector<24x1xf32>
    %94 = vector.extract_strided_slice %26 {offsets = [0, 768], sizes = [24, 128], strides = [1, 1]} : vector<24x2176xf32> to vector<24x128xf32>
    %95 = vector.broadcast %93 : vector<24x1xf32> to vector<24x128xf32>
    %96 = arith.mulf %95, %94 : vector<24x128xf32>
    %97 = vector.extract_strided_slice %24 {offsets = [0, 6], sizes = [24, 1], strides = [1, 1]} : vector<24x16xf32> to vector<24x1xf32>
    %98 = vector.extract_strided_slice %28 {offsets = [0, 768], sizes = [24, 128], strides = [1, 1]} : vector<24x2048xf32> to vector<24x128xf32>
    %99 = vector.broadcast %97 : vector<24x1xf32> to vector<24x128xf32>
    %100 = arith.mulf %99, %98 : vector<24x128xf32>
    %101 = arith.addf %96, %100 : vector<24x128xf32>
    %102 = arith.addf %92, %101 : vector<24x128xf32>
    %103 = vector.extract_strided_slice %23 {offsets = [0, 7], sizes = [24, 1], strides = [1, 1]} : vector<24x16xf32> to vector<24x1xf32>
    %104 = vector.extract_strided_slice %26 {offsets = [0, 896], sizes = [24, 128], strides = [1, 1]} : vector<24x2176xf32> to vector<24x128xf32>
    %105 = vector.broadcast %103 : vector<24x1xf32> to vector<24x128xf32>
    %106 = arith.mulf %105, %104 : vector<24x128xf32>
    %107 = vector.extract_strided_slice %24 {offsets = [0, 7], sizes = [24, 1], strides = [1, 1]} : vector<24x16xf32> to vector<24x1xf32>
    %108 = vector.extract_strided_slice %28 {offsets = [0, 896], sizes = [24, 128], strides = [1, 1]} : vector<24x2048xf32> to vector<24x128xf32>
    %109 = vector.broadcast %107 : vector<24x1xf32> to vector<24x128xf32>
    %110 = arith.mulf %109, %108 : vector<24x128xf32>
    %111 = arith.addf %106, %110 : vector<24x128xf32>
    %112 = arith.addf %102, %111 : vector<24x128xf32>
    %113 = vector.extract_strided_slice %23 {offsets = [0, 8], sizes = [24, 1], strides = [1, 1]} : vector<24x16xf32> to vector<24x1xf32>
    %114 = vector.extract_strided_slice %26 {offsets = [0, 1024], sizes = [24, 128], strides = [1, 1]} : vector<24x2176xf32> to vector<24x128xf32>
    %115 = vector.broadcast %113 : vector<24x1xf32> to vector<24x128xf32>
    %116 = arith.mulf %115, %114 : vector<24x128xf32>
    %117 = vector.extract_strided_slice %24 {offsets = [0, 8], sizes = [24, 1], strides = [1, 1]} : vector<24x16xf32> to vector<24x1xf32>
    %118 = vector.extract_strided_slice %28 {offsets = [0, 1024], sizes = [24, 128], strides = [1, 1]} : vector<24x2048xf32> to vector<24x128xf32>
    %119 = vector.broadcast %117 : vector<24x1xf32> to vector<24x128xf32>
    %120 = arith.mulf %119, %118 : vector<24x128xf32>
    %121 = arith.addf %116, %120 : vector<24x128xf32>
    %122 = arith.addf %112, %121 : vector<24x128xf32>
    %123 = vector.extract_strided_slice %23 {offsets = [0, 9], sizes = [24, 1], strides = [1, 1]} : vector<24x16xf32> to vector<24x1xf32>
    %124 = vector.extract_strided_slice %26 {offsets = [0, 1152], sizes = [24, 128], strides = [1, 1]} : vector<24x2176xf32> to vector<24x128xf32>
    %125 = vector.broadcast %123 : vector<24x1xf32> to vector<24x128xf32>
    %126 = arith.mulf %125, %124 : vector<24x128xf32>
    %127 = vector.extract_strided_slice %24 {offsets = [0, 9], sizes = [24, 1], strides = [1, 1]} : vector<24x16xf32> to vector<24x1xf32>
    %128 = vector.extract_strided_slice %28 {offsets = [0, 1152], sizes = [24, 128], strides = [1, 1]} : vector<24x2048xf32> to vector<24x128xf32>
    %129 = vector.broadcast %127 : vector<24x1xf32> to vector<24x128xf32>
    %130 = arith.mulf %129, %128 : vector<24x128xf32>
    %131 = arith.addf %126, %130 : vector<24x128xf32>
    %132 = arith.addf %122, %131 : vector<24x128xf32>
    %133 = vector.extract_strided_slice %23 {offsets = [0, 10], sizes = [24, 1], strides = [1, 1]} : vector<24x16xf32> to vector<24x1xf32>
    %134 = vector.extract_strided_slice %26 {offsets = [0, 1280], sizes = [24, 128], strides = [1, 1]} : vector<24x2176xf32> to vector<24x128xf32>
    %135 = vector.broadcast %133 : vector<24x1xf32> to vector<24x128xf32>
    %136 = arith.mulf %135, %134 : vector<24x128xf32>
    %137 = vector.extract_strided_slice %24 {offsets = [0, 10], sizes = [24, 1], strides = [1, 1]} : vector<24x16xf32> to vector<24x1xf32>
    %138 = vector.extract_strided_slice %28 {offsets = [0, 1280], sizes = [24, 128], strides = [1, 1]} : vector<24x2048xf32> to vector<24x128xf32>
    %139 = vector.broadcast %137 : vector<24x1xf32> to vector<24x128xf32>
    %140 = arith.mulf %139, %138 : vector<24x128xf32>
    %141 = arith.addf %136, %140 : vector<24x128xf32>
    %142 = arith.addf %132, %141 : vector<24x128xf32>
    %143 = vector.extract_strided_slice %23 {offsets = [0, 11], sizes = [24, 1], strides = [1, 1]} : vector<24x16xf32> to vector<24x1xf32>
    %144 = vector.extract_strided_slice %26 {offsets = [0, 1408], sizes = [24, 128], strides = [1, 1]} : vector<24x2176xf32> to vector<24x128xf32>
    %145 = vector.broadcast %143 : vector<24x1xf32> to vector<24x128xf32>
    %146 = arith.mulf %145, %144 : vector<24x128xf32>
    %147 = vector.extract_strided_slice %24 {offsets = [0, 11], sizes = [24, 1], strides = [1, 1]} : vector<24x16xf32> to vector<24x1xf32>
    %148 = vector.extract_strided_slice %28 {offsets = [0, 1408], sizes = [24, 128], strides = [1, 1]} : vector<24x2048xf32> to vector<24x128xf32>
    %149 = vector.broadcast %147 : vector<24x1xf32> to vector<24x128xf32>
    %150 = arith.mulf %149, %148 : vector<24x128xf32>
    %151 = arith.addf %146, %150 : vector<24x128xf32>
    %152 = arith.addf %142, %151 : vector<24x128xf32>
    %153 = vector.extract_strided_slice %23 {offsets = [0, 12], sizes = [24, 1], strides = [1, 1]} : vector<24x16xf32> to vector<24x1xf32>
    %154 = vector.extract_strided_slice %26 {offsets = [0, 1536], sizes = [24, 128], strides = [1, 1]} : vector<24x2176xf32> to vector<24x128xf32>
    %155 = vector.broadcast %153 : vector<24x1xf32> to vector<24x128xf32>
    %156 = arith.mulf %155, %154 : vector<24x128xf32>
    %157 = vector.extract_strided_slice %24 {offsets = [0, 12], sizes = [24, 1], strides = [1, 1]} : vector<24x16xf32> to vector<24x1xf32>
    %158 = vector.extract_strided_slice %28 {offsets = [0, 1536], sizes = [24, 128], strides = [1, 1]} : vector<24x2048xf32> to vector<24x128xf32>
    %159 = vector.broadcast %157 : vector<24x1xf32> to vector<24x128xf32>
    %160 = arith.mulf %159, %158 : vector<24x128xf32>
    %161 = arith.addf %156, %160 : vector<24x128xf32>
    %162 = arith.addf %152, %161 : vector<24x128xf32>
    %163 = vector.extract_strided_slice %23 {offsets = [0, 13], sizes = [24, 1], strides = [1, 1]} : vector<24x16xf32> to vector<24x1xf32>
    %164 = vector.extract_strided_slice %26 {offsets = [0, 1664], sizes = [24, 128], strides = [1, 1]} : vector<24x2176xf32> to vector<24x128xf32>
    %165 = vector.broadcast %163 : vector<24x1xf32> to vector<24x128xf32>
    %166 = arith.mulf %165, %164 : vector<24x128xf32>
    %167 = vector.extract_strided_slice %24 {offsets = [0, 13], sizes = [24, 1], strides = [1, 1]} : vector<24x16xf32> to vector<24x1xf32>
    %168 = vector.extract_strided_slice %28 {offsets = [0, 1664], sizes = [24, 128], strides = [1, 1]} : vector<24x2048xf32> to vector<24x128xf32>
    %169 = vector.broadcast %167 : vector<24x1xf32> to vector<24x128xf32>
    %170 = arith.mulf %169, %168 : vector<24x128xf32>
    %171 = arith.addf %166, %170 : vector<24x128xf32>
    %172 = arith.addf %162, %171 : vector<24x128xf32>
    %173 = vector.extract_strided_slice %23 {offsets = [0, 14], sizes = [24, 1], strides = [1, 1]} : vector<24x16xf32> to vector<24x1xf32>
    %174 = vector.extract_strided_slice %26 {offsets = [0, 1792], sizes = [24, 128], strides = [1, 1]} : vector<24x2176xf32> to vector<24x128xf32>
    %175 = vector.broadcast %173 : vector<24x1xf32> to vector<24x128xf32>
    %176 = arith.mulf %175, %174 : vector<24x128xf32>
    %177 = vector.extract_strided_slice %24 {offsets = [0, 14], sizes = [24, 1], strides = [1, 1]} : vector<24x16xf32> to vector<24x1xf32>
    %178 = vector.extract_strided_slice %28 {offsets = [0, 1792], sizes = [24, 128], strides = [1, 1]} : vector<24x2048xf32> to vector<24x128xf32>
    %179 = vector.broadcast %177 : vector<24x1xf32> to vector<24x128xf32>
    %180 = arith.mulf %179, %178 : vector<24x128xf32>
    %181 = arith.addf %176, %180 : vector<24x128xf32>
    %182 = arith.addf %172, %181 : vector<24x128xf32>
    %183 = vector.extract_strided_slice %23 {offsets = [0, 15], sizes = [24, 1], strides = [1, 1]} : vector<24x16xf32> to vector<24x1xf32>
    %184 = vector.extract_strided_slice %26 {offsets = [0, 1920], sizes = [24, 128], strides = [1, 1]} : vector<24x2176xf32> to vector<24x128xf32>
    %185 = vector.broadcast %183 : vector<24x1xf32> to vector<24x128xf32>
    %186 = arith.mulf %185, %184 : vector<24x128xf32>
    %187 = vector.extract_strided_slice %24 {offsets = [0, 15], sizes = [24, 1], strides = [1, 1]} : vector<24x16xf32> to vector<24x1xf32>
    %188 = vector.extract_strided_slice %28 {offsets = [0, 1920], sizes = [24, 128], strides = [1, 1]} : vector<24x2048xf32> to vector<24x128xf32>
    %189 = vector.broadcast %187 : vector<24x1xf32> to vector<24x128xf32>
    %190 = arith.mulf %189, %188 : vector<24x128xf32>
    %191 = arith.addf %186, %190 : vector<24x128xf32>
    %192 = arith.addf %182, %191 : vector<24x128xf32>
    %cst_22 = arith.constant 0.000000e+00 : f32
    %193 = vector.broadcast %cst_22 : f32 to vector<24x128xf32>
    %194 = arith.maximumf %192, %193 : vector<24x128xf32>
    %c0_23 = arith.constant 0 : index
    %c0_24 = arith.constant 0 : index
    %195 = vector.load %arg10[%c0_23, %c0_24] : memref<1x128xf32, #tpu.memory_space<vmem>>, vector<1x128xf32>
    %196 = vector.broadcast %195 : vector<1x128xf32> to vector<24x128xf32>
    %197 = arith.mulf %194, %196 : vector<24x128xf32>
    %cst_25 = arith.constant dense<0.000000e+00> : vector<24xf32>
    %198 = vector.multi_reduction <add>, %197, %cst_25 [1] : vector<24x128xf32> to vector<24xf32>
    %199 = vector.shape_cast %198 : vector<24xf32> to vector<24x1xf32>
    %c0_26 = arith.constant 0 : index
    %c0_27 = arith.constant 0 : index
    %200 = vector.load %arg11[%c0_26, %c0_27] : memref<1x1xf32, #tpu.memory_space<vmem>>, vector<1x1xf32>
    %201 = vector.broadcast %200 : vector<1x1xf32> to vector<24x1xf32>
    %202 = arith.addf %199, %201 : vector<24x1xf32>
    %c0_28 = arith.constant 0 : index
    %c0_29 = arith.constant 0 : index
    %203 = vector.load %arg12[%c0_28, %c0_29] : memref<24x1xf32, #tpu.memory_space<vmem>>, vector<24x1xf32>
    tpu.vector_store %arg12[%c0_28, %c0_29], %202 {strides = array<i32>} : memref<24x1xf32, #tpu.memory_space<vmem>>, vector<24x1xf32>,
    return
  }
  func.func @transform_0(%arg0: i32) -> (i32, i32) {
    %c0_i32 = arith.constant 0 : i32
    %c0_i32_0 = arith.constant 0 : i32
    return %arg0, %c0_i32 : i32, i32
  }
  func.func @transform_1(%arg0: i32) -> (i32, i32) {
    %c0_i32 = arith.constant 0 : i32
    %c0_i32_0 = arith.constant 0 : i32
    return %arg0, %c0_i32 : i32, i32
  }
  func.func @transform_2(%arg0: i32) -> (i32, i32) {
    %c0_i32 = arith.constant 0 : i32
    %c0_i32_0 = arith.constant 0 : i32
    %c0_i32_1 = arith.constant 0 : i32
    return %c0_i32, %c0_i32_0 : i32, i32
  }
  func.func @transform_3(%arg0: i32) -> (i32, i32) {
    %c0_i32 = arith.constant 0 : i32
    %c0_i32_0 = arith.constant 0 : i32
    %c0_i32_1 = arith.constant 0 : i32
    return %c0_i32, %c0_i32_0 : i32, i32
  }
  func.func @transform_4(%arg0: i32) -> (i32, i32) {
    %c0_i32 = arith.constant 0 : i32
    %c0_i32_0 = arith.constant 0 : i32
    %c0_i32_1 = arith.constant 0 : i32
    return %c0_i32, %c0_i32_0 : i32, i32
  }
  func.func @transform_5(%arg0: i32) -> (i32, i32) {
    %c0_i32 = arith.constant 0 : i32
    %c0_i32_0 = arith.constant 0 : i32
    %c0_i32_1 = arith.constant 0 : i32
    return %c0_i32, %c0_i32_0 : i32, i32
  }
  func.func @transform_6(%arg0: i32) -> (i32, i32) {
    %c0_i32 = arith.constant 0 : i32
    %c0_i32_0 = arith.constant 0 : i32
    %c0_i32_1 = arith.constant 0 : i32
    return %c0_i32, %c0_i32_0 : i32, i32
  }
  func.func @transform_7(%arg0: i32) -> (i32, i32) {
    %c0_i32 = arith.constant 0 : i32
    %c0_i32_0 = arith.constant 0 : i32
    %c0_i32_1 = arith.constant 0 : i32
    return %c0_i32, %c0_i32_0 : i32, i32
  }
  func.func @transform_8(%arg0: i32) -> (i32, i32) {
    %c0_i32 = arith.constant 0 : i32
    %c0_i32_0 = arith.constant 0 : i32
    %c0_i32_1 = arith.constant 0 : i32
    return %c0_i32, %c0_i32_0 : i32, i32
  }
  func.func @transform_9(%arg0: i32) -> (i32, i32) {
    %c0_i32 = arith.constant 0 : i32
    %c0_i32_0 = arith.constant 0 : i32
    %c0_i32_1 = arith.constant 0 : i32
    return %c0_i32, %c0_i32_0 : i32, i32
  }
  func.func @transform_10(%arg0: i32) -> (i32, i32) {
    %c0_i32 = arith.constant 0 : i32
    %c0_i32_0 = arith.constant 0 : i32
    %c0_i32_1 = arith.constant 0 : i32
    return %c0_i32, %c0_i32_0 : i32, i32
  }
  func.func @transform_11(%arg0: i32) -> (i32, i32) {
    %c0_i32 = arith.constant 0 : i32
    %c0_i32_0 = arith.constant 0 : i32
    return %arg0, %c0_i32 : i32, i32
  }
}

</mosaic_0001>

<llo_original>
// kernel: tpu_custom_call.1
$region0: #{tpu_custom_call.1}
  #allocation0 [shape = 'u32[]', space=smem, size = 0x4, offset = 0x4, fixed_abs, tag = 'smem constant byte address 0x4 - core index']
  #allocation1 [shape = 'u32[144,128]{1,0:T(1,128)}', space=vmem, size = 0x12000, scoped, tag = 'internal scratch']
  #allocation2 [shape = 'f32[1,1]{1,0:T(1,128)S(1)}', space=vmem, size = 0x200, scoped, tag = 'scoped memory for tpu_custom_call.1']
  %s0 = inlined_call_operand.vmem [shape: f32[24,32], index: 0, kind: input, shape index: {}]
  %s1 = inlined_call_operand.vmem [shape: f32[24,32], index: 1, kind: input, shape index: {}]
  %s2 = inlined_call_operand.vmem [shape: f32[32,16], index: 2, kind: input, shape index: {}]
  %s3 = inlined_call_operand.vmem [shape: f32[1,16], index: 3, kind: input, shape index: {}]
  %s4 = inlined_call_operand.hbm [shape: f32[16,16], index: 4, kind: input, shape index: {}]
  %s5 = inlined_call_operand.vmem [shape: f32[1,16], index: 5, kind: input, shape index: {}]
  %s6 = inlined_call_operand.hbm [shape: f32[16,2176], index: 6, kind: input, shape index: {}]
  %s7 = inlined_call_operand.hbm [shape: f32[16,2048], index: 7, kind: input, shape index: {}]
  %s8 = inlined_call_operand.vmem [shape: f32[1,128], index: 8, kind: input, shape index: {}]
  %s9 = inlined_call_operand.vmem [shape: f32[1,128], index: 9, kind: input, shape index: {}]
  %s10 = inlined_call_operand.<no memory space> [shape: f32[1,1], index: 10, kind: input, shape index: {}]
  %s11 = inlined_call_operand.vmem [shape: f32[24,1], index: 11, kind: output, shape index: {}]
  %s12 = sld [smem:[#allocation0]]
  $region66: #{tpu_custom_call.1} parent=0
    _
  %s14 = ssub.s32 1, %s12
  %s15 = scalar_select 0, %s14, %s12
  %v16 = vstv %s10
  %17 = vst [vmem:[#allocation2] sm:$0x1] %v16
  $region1: #{tpu_custom_call.1} parent=0
    #allocation3 [shape = 'u8[8192]{0}', space=vmem, size = 0x2000, scoped, tag = 'input window, operand 4, single buffered']
    #allocation4 [shape = 's32[1]{0}', space=sflag, size = 0x4, scoped, tag = 'scoped memory for tpu_custom_call.1']
    #allocation5 [shape = 'u8[139264]{0}', space=vmem, size = 0x22000, scoped, tag = 'input window, operand 6, single buffered']
    #allocation6 [shape = 's32[1]{0}', space=sflag, size = 0x4, scoped, tag = 'scoped memory for tpu_custom_call.1']
    #allocation7 [shape = 'u8[131072]{0}', space=vmem, size = 0x20000, scoped, tag = 'input window, operand 7, single buffered']
    %18 = vsyncpa [#allocation4], 0
    %19 = vsyncpa [#allocation6], 0
    // Predicated region
    $region2: #{tpu_custom_call.1} parent=1 // pred_check
      _
    $region3: #{tpu_custom_call.1} parent=1 // pred_check_branch
      %21 = sbr.rel (0) target = $region5
    $region4: #{tpu_custom_call.1} parent=1 // pred_region
      _
    $region5: #{tpu_custom_call.1} parent=1 // pred_fallthru
      _
    // Predicated region
    $region6: #{tpu_custom_call.1} parent=1 // pred_check
      _
    $region7: #{tpu_custom_call.1} parent=1 // pred_check_branch
      %23 = sbr.rel (0) target = $region9
    $region8: #{tpu_custom_call.1} parent=1 // pred_region
      _
    $region9: #{tpu_custom_call.1} parent=1 // pred_fallthru
      _
    // Predicated region
    $region10: #{tpu_custom_call.1} parent=1 // pred_check
      _
    $region11: #{tpu_custom_call.1} parent=1 // pred_check_branch
      %25 = sbr.rel (0) target = $region13
    $region12: #{tpu_custom_call.1} parent=1 // pred_region
      _
    $region13: #{tpu_custom_call.1} parent=1 // pred_fallthru
      _
    // Predicated region
    $region14: #{tpu_custom_call.1} parent=1 // pred_check
      _
    $region15: #{tpu_custom_call.1} parent=1 // pred_check_branch
      %27 = sbr.rel (0) target = $region17
    $region16: #{tpu_custom_call.1} parent=1 // pred_region
      _
    $region17: #{tpu_custom_call.1} parent=1 // pred_fallthru
      _
    // Predicated region
    $region18: #{tpu_custom_call.1} parent=1 // pred_check
      _
    $region19: #{tpu_custom_call.1} parent=1 // pred_check_branch
      %29 = sbr.rel (0) target = $region21
    $region20: #{tpu_custom_call.1} parent=1 // pred_region
      %s31 = ssub.s32 256, 256
      %32 = vsyncadd [#allocation4], %s31
      %s33 = sshll.u32 [#allocation3], 4
      %s34 = int_to_ptr.vmem [resolvable:$true] %s33
      %39 = dma.hbm_to_vmem [thread:$0]  %s4, 256, %s34, [#allocation4], 128, 128, 8
    $region21: #{tpu_custom_call.1} parent=1 // pred_fallthru
      _
    // Predicated region
    $region22: #{tpu_custom_call.1} parent=1 // pred_check
      _
    $region23: #{tpu_custom_call.1} parent=1 // pred_check_branch
      %41 = sbr.rel (0) target = $region25
    $region24: #{tpu_custom_call.1} parent=1 // pred_region
      _
    $region25: #{tpu_custom_call.1} parent=1 // pred_fallthru
      _
    // Predicated region
    $region26: #{tpu_custom_call.1} parent=1 // pred_check
      _
    $region27: #{tpu_custom_call.1} parent=1 // pred_check_branch
      %43 = sbr.rel (0) target = $region29
    $region28: #{tpu_custom_call.1} parent=1 // pred_region
      %s45 = ssub.s32 4352, 4352
      %46 = vsyncadd [#allocation6], %s45
      %s47 = sshll.u32 [#allocation5], 4
      %s48 = int_to_ptr.vmem [resolvable:$true] %s47
      %53 = dma.hbm_to_vmem [thread:$0]  %s6, 4352, %s48, [#allocation6], 2176, 2176, 136
    $region29: #{tpu_custom_call.1} parent=1 // pred_fallthru
      _
    // Predicated region
    $region30: #{tpu_custom_call.1} parent=1 // pred_check
      _
    $region31: #{tpu_custom_call.1} parent=1 // pred_check_branch
      %55 = sbr.rel (0) target = $region33
    $region32: #{tpu_custom_call.1} parent=1 // pred_region
      %s57 = ssub.s32 4096, 4096
      %58 = vsyncadd [#allocation6], %s57
      %s59 = sshll.u32 [#allocation7], 4
      %s60 = int_to_ptr.vmem [resolvable:$true] %s59
      %65 = dma.hbm_to_vmem [thread:$0]  %s7, 4096, %s60, [#allocation6], 2048, 2048, 128
    $region33: #{tpu_custom_call.1} parent=1 // pred_fallthru
      _
    // Predicated region
    $region34: #{tpu_custom_call.1} parent=1 // pred_check
      _
    $region35: #{tpu_custom_call.1} parent=1 // pred_check_branch
      %67 = sbr.rel (0) target = $region37
    $region36: #{tpu_custom_call.1} parent=1 // pred_region
      _
    $region37: #{tpu_custom_call.1} parent=1 // pred_fallthru
      _
    // Predicated region
    $region38: #{tpu_custom_call.1} parent=1 // pred_check
      _
    $region39: #{tpu_custom_call.1} parent=1 // pred_check_branch
      %69 = sbr.rel (0) target = $region41
    $region40: #{tpu_custom_call.1} parent=1 // pred_region
      _
    $region41: #{tpu_custom_call.1} parent=1 // pred_fallthru
      _
    // Predicated region
    $region42: #{tpu_custom_call.1} parent=1 // pred_check
      _
    $region43: #{tpu_custom_call.1} parent=1 // pred_check_branch
      %71 = sbr.rel (0) target = $region45
    $region44: #{tpu_custom_call.1} parent=1 // pred_region
      _
    $region45: #{tpu_custom_call.1} parent=1 // pred_fallthru
      _
    // Predicated region
    $region46: #{tpu_custom_call.1} parent=1 // pred_check
      _
    $region47: #{tpu_custom_call.1} parent=1 // pred_check_branch
      %73 = sbr.rel (0) target = $region49
    $region48: #{tpu_custom_call.1} parent=1 // pred_region
      %74 = dma.done [#allocation4], 256
    $region49: #{tpu_custom_call.1} parent=1 // pred_fallthru
      _
    // Predicated region
    $region50: #{tpu_custom_call.1} parent=1 // pred_check
      _
    $region51: #{tpu_custom_call.1} parent=1 // pred_check_branch
      %76 = sbr.rel (0) target = $region53
    $region52: #{tpu_custom_call.1} parent=1 // pred_region
      %77 = dma.done [#allocation6], 4352
    $region53: #{tpu_custom_call.1} parent=1 // pred_fallthru
      _
    // Predicated region
    $region54: #{tpu_custom_call.1} parent=1 // pred_check
      _
    $region55: #{tpu_custom_call.1} parent=1 // pred_check_branch
      %79 = sbr.rel (0) target = $region57
    $region56: #{tpu_custom_call.1} parent=1 // pred_region
      %80 = dma.done [#allocation6], 4096
    $region57: #{tpu_custom_call.1} parent=1 // pred_fallthru
      _
    %v81 = vld [vmem:[%s0] sm:$0xff]
    %v82 = vld [vmem:[%s0 + $0x8] sm:$0xff]
    %v83 = vld [vmem:[%s0 + $0x10] sm:$0xff]
    %v84 = vld [vmem:[%s1] sm:$0xff]
    %v85 = vld [vmem:[%s1 + $0x8] sm:$0xff]
    %v86 = vld [vmem:[%s1 + $0x10] sm:$0xff]
    %v87 = vld [vmem:[%s2] sm:$0xff]
    %v88 = vld [vmem:[%s2 + $0x8] sm:$0xff]
    %v89 = vld [vmem:[%s2 + $0x10] sm:$0xff]
    %v90 = vld [vmem:[%s2 + $0x18] sm:$0xff]
    %v91 = vld [vmem:[%s3] sm:$0x1]
    %v93 = vlaneseq
    %v94 = vshrl.u32 %v93, 7
    %v95 = vsub.s32 0, %v94
    %v96 = vrot.slane %v91, %v95
    %vm98 = vcmask 261120
    %v100 = vsel %vm98, %v81, 0
    %v103 = vsel %vm98, %v82, 0
    %v106 = vsel %vm98, %v83, 0
    %v109 = vsel %vm98, %v84, 0
    %v112 = vsel %vm98, %v85, 0
    %v115 = vsel %vm98, %v86, 0
    %117 = vmatprep.subr.mxu0 0.0
    %118 = vmatpush1.msra.mxu0 0.0
    %119 = vmatprep.subr.mxu0 0.0
    %120 = vmatpush1.msra.mxu0 0.0
    %121 = vmatprep.subr.mxu0 0.0
    %122 = vmatpush1.msra.mxu0 0.0
    %123 = vmatprep.subr.mxu0 0.0
    %124 = vmatpush1.msra.mxu0 0.0
    %125 = vmatprep.subr.mxu0 0.0
    %126 = vmatpush1.msra.mxu0 0.0
    %127 = vmatprep.subr.mxu0 0.0
    %128 = vmatpush1.msra.mxu0 0.0
    %129 = vmatprep.subr.mxu0 0.0
    %130 = vmatpush1.msra.mxu0 0.0
    %131 = vmatprep.subr.mxu0 0.0
    %132 = vmatpush1.msra.mxu0 0.0
    %133 = vmatprep.subr.mxu0 0.0
    %134 = vmatpush1.msra.mxu0 0.0
    %135 = vmatprep.subr.mxu0 0.0
    %136 = vmatpush1.msra.mxu0 0.0
    %137 = vmatprep.subr.mxu0 0.0
    %138 = vmatpush1.msra.mxu0 0.0
    %139 = vmatprep.subr.mxu0 0.0
    %140 = vmatpush1.msra.mxu0 0.0
    %141 = vmatprep.subr.mxu0 0.0
    %142 = vmatpush1.msra.mxu0 %v90
    %143 = vmatprep.subr.mxu0 0.0
    %144 = vmatpush1.msra.mxu0 %v89
    %145 = vmatprep.subr.mxu0 0.0
    %146 = vmatpush1.msra.mxu0 %v88
    %147 = vmatprep.subr.mxu0 0.0
    %148 = vmatpush1.msra.mxu0 %v87
    %149 = vmatprep.subr.mxu0 0.0
    %150 = vmatpush2.msra.mxu0 0.0
    %151 = vmatprep.subr.mxu0 0.0
    %152 = vmatpush2.msra.mxu0 0.0
    %153 = vmatprep.subr.mxu0 0.0
    %154 = vmatpush2.msra.mxu0 0.0
    %155 = vmatprep.subr.mxu0 0.0
    %156 = vmatpush2.msra.mxu0 0.0
    %157 = vmatprep.subr.mxu0 0.0
    %158 = vmatpush2.msra.mxu0 0.0
    %159 = vmatprep.subr.mxu0 0.0
    %160 = vmatpush2.msra.mxu0 0.0
    %161 = vmatprep.subr.mxu0 0.0
    %162 = vmatpush2.msra.mxu0 0.0
    %163 = vmatprep.subr.mxu0 0.0
    %164 = vmatpush2.msra.mxu0 0.0
    %165 = vmatprep.subr.mxu0 0.0
    %166 = vmatpush2.msra.mxu0 0.0
    %167 = vmatprep.subr.mxu0 0.0
    %168 = vmatpush2.msra.mxu0 0.0
    %169 = vmatprep.subr.mxu0 0.0
    %170 = vmatpush2.msra.mxu0 0.0
    %171 = vmatprep.subr.mxu0 0.0
    %172 = vmatpush2.msra.mxu0 0.0
    %173 = vmatprep.subr.mxu0 0.0
    %174 = vmatpush2.msra.mxu0 0.0
    %175 = vmatprep.subr.mxu0 0.0
    %176 = vmatpush2.msra.mxu0 0.0
    %177 = vmatprep.subr.mxu0 0.0
    %178 = vmatpush2.msra.mxu0 0.0
    %179 = vmatprep.subr.mxu0 0.0
    %180 = vmatpush2.msra.mxu0 0.0
    %181 = vmatprep.mubr.f32.mxu0 0.0
    %182 = vmatmul.mubr.f32.gmra.mxu0 %v100
    %v183 = vpop.f32.mrf.mxu0
    %v184 = vadd.f32 %v96, %v183
    %v185 = vpop.f32.mrf.mxu0
    %186 = vmatprep.mubr.f32.mxu0 0.0
    %187 = vmatmul.mubr.f32.gmra.mxu0 %v103
    %v188 = vpop.f32.mrf.mxu0
    %v189 = vadd.f32 %v96, %v188
    %v190 = vpop.f32.mrf.mxu0
    %191 = vmatprep.mubr.f32.mxu0 0.0
    %192 = vmatmul.mubr.f32.gmra.mxu0 %v106
    %v193 = vpop.f32.mrf.mxu0
    %v194 = vadd.f32 %v96, %v193
    %v195 = vpop.f32.mrf.mxu0
    %196 = vmatprep.mubr.f32.mxu0 0.0
    %197 = vmatmul.mubr.f32.gmra.mxu0 %v109
    %v198 = vpop.f32.mrf.mxu0
    %v199 = vadd.f32 %v96, %v198
    %v200 = vpop.f32.mrf.mxu0
    %201 = vmatprep.mubr.f32.mxu0 0.0
    %202 = vmatmul.mubr.f32.gmra.mxu0 %v112
    %v203 = vpop.f32.mrf.mxu0
    %v204 = vadd.f32 %v96, %v203
    %v205 = vpop.f32.mrf.mxu0
    %206 = vmatprep.mubr.f32.mxu0 0.0
    %207 = vmatmul.mubr.f32.gmra.mxu0 %v115
    %v208 = vpop.f32.mrf.mxu0
    %v209 = vadd.f32 %v96, %v208
    %v210 = vpop.f32.mrf.mxu0
    %211 = vdwg.mxu0
    %v212 = vmul.f32 %v184, %v184
    %v213 = vmul.f32 %v189, %v189
    %v214 = vmul.f32 %v194, %v194
    %v215 = vmul.f32 %v199, %v199
    %v216 = vmul.f32 %v204, %v204
    %v217 = vmul.f32 %v209, %v209
    %vm218 = vcmask 130048
    %v219 = vsel %vm218, %v212, 0.0
    %220 = vadd.xlane.f32.xlu0 %v219
    %v221 = vpop.xlane.xlu0 %220
    %v222 = vsel %vm218, %v213, 0.0
    %223 = vadd.xlane.f32.xlu0 %v222
    %v224 = vpop.xlane.xlu0 %223
    %v225 = vsel %vm218, %v214, 0.0
    %226 = vadd.xlane.f32.xlu0 %v225
    %v227 = vpop.xlane.xlu0 %226
    %v228 = vsel %vm218, %v215, 0.0
    %229 = vadd.xlane.f32.xlu0 %v228
    %v230 = vpop.xlane.xlu0 %229
    %v231 = vsel %vm218, %v216, 0.0
    %232 = vadd.xlane.f32.xlu0 %v231
    %v233 = vpop.xlane.xlu0 %232
    %v234 = vsel %vm218, %v217, 0.0
    %235 = vadd.xlane.f32.xlu0 %v234
    %v236 = vpop.xlane.xlu0 %235
    %v237 = vmax.f32 %v221, 1e-24
    %v238 = vmax.f32 %v224, 1e-24
    %v239 = vmax.f32 %v227, 1e-24
    %v240 = vmax.f32 %v230, 1e-24
    %v241 = vmax.f32 %v233, 1e-24
    %v242 = vmax.f32 %v236, 1e-24
    %v243 = vrsqrt.pop %v237
    %v244 = vrsqrt.pop %v238
    %v245 = vrsqrt.pop %v239
    %v246 = vrsqrt.pop %v240
    %v247 = vrsqrt.pop %v241
    %v248 = vrsqrt.pop %v242
    %v249 = vmul.f32 %v184, %v243
    %v250 = vmul.f32 %v189, %v244
    %v251 = vmul.f32 %v194, %v245
    %v252 = vmul.f32 %v199, %v246
    %v253 = vmul.f32 %v204, %v247
    %v254 = vmul.f32 %v209, %v248
    %v255 = vld [vmem:[#allocation3] sm:$0xff]
    %v256 = vld [vmem:[#allocation3 + $0x8] sm:$0xff]
    %v257 = vld [vmem:[%s5] sm:$0x1]
    %v259 = vlaneseq
    %v260 = vshrl.u32 %v259, 7
    %v261 = vsub.s32 0, %v260
    %v262 = vrot.slane %v257, %v261
    %v265 = vsel %vm218, %v249, 0
    %v268 = vsel %vm218, %v250, 0
    %v271 = vsel %vm218, %v251, 0
    %v274 = vsel %vm218, %v252, 0
    %v277 = vsel %vm218, %v253, 0
    %v280 = vsel %vm218, %v254, 0
    %282 = vmatprep.subr.mxu0 0.0
    %283 = vmatpush1.msra.mxu0 0.0
    %284 = vmatprep.subr.mxu0 0.0
    %285 = vmatpush1.msra.mxu0 0.0
    %286 = vmatprep.subr.mxu0 0.0
    %287 = vmatpush1.msra.mxu0 0.0
    %288 = vmatprep.subr.mxu0 0.0
    %289 = vmatpush1.msra.mxu0 0.0
    %290 = vmatprep.subr.mxu0 0.0
    %291 = vmatpush1.msra.mxu0 0.0
    %292 = vmatprep.subr.mxu0 0.0
    %293 = vmatpush1.msra.mxu0 0.0
    %294 = vmatprep.subr.mxu0 0.0
    %295 = vmatpush1.msra.mxu0 0.0
    %296 = vmatprep.subr.mxu0 0.0
    %297 = vmatpush1.msra.mxu0 0.0
    %298 = vmatprep.subr.mxu0 0.0
    %299 = vmatpush1.msra.mxu0 0.0
    %300 = vmatprep.subr.mxu0 0.0
    %301 = vmatpush1.msra.mxu0 0.0
    %302 = vmatprep.subr.mxu0 0.0
    %303 = vmatpush1.msra.mxu0 0.0
    %304 = vmatprep.subr.mxu0 0.0
    %305 = vmatpush1.msra.mxu0 0.0
    %306 = vmatprep.subr.mxu0 0.0
    %307 = vmatpush1.msra.mxu0 0.0
    %308 = vmatprep.subr.mxu0 0.0
    %309 = vmatpush1.msra.mxu0 0.0
    %310 = vmatprep.subr.mxu0 0.0
    %311 = vmatpush1.msra.mxu0 %v256
    %312 = vmatprep.subr.mxu0 0.0
    %313 = vmatpush1.msra.mxu0 %v255
    %314 = vmatprep.subr.mxu0 0.0
    %315 = vmatpush2.msra.mxu0 0.0
    %316 = vmatprep.subr.mxu0 0.0
    %317 = vmatpush2.msra.mxu0 0.0
    %318 = vmatprep.subr.mxu0 0.0
    %319 = vmatpush2.msra.mxu0 0.0
    %320 = vmatprep.subr.mxu0 0.0
    %321 = vmatpush2.msra.mxu0 0.0
    %322 = vmatprep.subr.mxu0 0.0
    %323 = vmatpush2.msra.mxu0 0.0
    %324 = vmatprep.subr.mxu0 0.0
    %325 = vmatpush2.msra.mxu0 0.0
    %326 = vmatprep.subr.mxu0 0.0
    %327 = vmatpush2.msra.mxu0 0.0
    %328 = vmatprep.subr.mxu0 0.0
    %329 = vmatpush2.msra.mxu0 0.0
    %330 = vmatprep.subr.mxu0 0.0
    %331 = vmatpush2.msra.mxu0 0.0
    %332 = vmatprep.subr.mxu0 0.0
    %333 = vmatpush2.msra.mxu0 0.0
    %334 = vmatprep.subr.mxu0 0.0
    %335 = vmatpush2.msra.mxu0 0.0
    %336 = vmatprep.subr.mxu0 0.0
    %337 = vmatpush2.msra.mxu0 0.0
    %338 = vmatprep.subr.mxu0 0.0
    %339 = vmatpush2.msra.mxu0 0.0
    %340 = vmatprep.subr.mxu0 0.0
    %341 = vmatpush2.msra.mxu0 0.0
    %342 = vmatprep.subr.mxu0 0.0
    %343 = vmatpush2.msra.mxu0 0.0
    %344 = vmatprep.subr.mxu0 0.0
    %345 = vmatpush2.msra.mxu0 0.0
    %346 = vmatprep.mubr.f32.mxu0 0.0
    %347 = vmatmul.mubr.f32.gmra.mxu0 %v265
    %v348 = vpop.f32.mrf.mxu0
    %v349 = vadd.f32 %v262, %v348
    %v350 = vpop.f32.mrf.mxu0
    %351 = vmatprep.mubr.f32.mxu0 0.0
    %352 = vmatmul.mubr.f32.gmra.mxu0 %v268
    %v353 = vpop.f32.mrf.mxu0
    %v354 = vadd.f32 %v262, %v353
    %v355 = vpop.f32.mrf.mxu0
    %356 = vmatprep.mubr.f32.mxu0 0.0
    %357 = vmatmul.mubr.f32.gmra.mxu0 %v271
    %v358 = vpop.f32.mrf.mxu0
    %v359 = vadd.f32 %v262, %v358
    %v360 = vpop.f32.mrf.mxu0
    %361 = vmatprep.mubr.f32.mxu0 0.0
    %362 = vmatmul.mubr.f32.gmra.mxu0 %v274
    %v363 = vpop.f32.mrf.mxu0
    %v364 = vadd.f32 %v262, %v363
    %v365 = vpop.f32.mrf.mxu0
    %366 = vmatprep.mubr.f32.mxu0 0.0
    %367 = vmatmul.mubr.f32.gmra.mxu0 %v277
    %v368 = vpop.f32.mrf.mxu0
    %v369 = vadd.f32 %v262, %v368
    %v370 = vpop.f32.mrf.mxu0
    %371 = vmatprep.mubr.f32.mxu0 0.0
    %372 = vmatmul.mubr.f32.gmra.mxu0 %v280
    %v373 = vpop.f32.mrf.mxu0
    %v374 = vadd.f32 %v262, %v373
    %v375 = vpop.f32.mrf.mxu0
    %376 = vdwg.mxu0
    %v377 = vadd.f32 %v349, %v364
    %v378 = vadd.f32 %v354, %v369
    %v379 = vadd.f32 %v359, %v374
    %v380 = vsub.f32 %v349, %v364
    %v381 = vsub.f32 %v354, %v369
    %v382 = vsub.f32 %v359, %v374
    %v383 = vld [vmem:[#allocation5] sm:$0xff]
    %v384 = vld [vmem:[#allocation5 + $0x8] sm:$0xff]
    %v385 = vld [vmem:[#allocation5 + $0x10] sm:$0xff]
    %v386 = vld [vmem:[#allocation5 + $0x18] sm:$0xff]
    %v387 = vld [vmem:[#allocation5 + $0x20] sm:$0xff]
    %v388 = vld [vmem:[#allocation5 + $0x28] sm:$0xff]
    %v389 = vld [vmem:[#allocation5 + $0x30] sm:$0xff]
    %v390 = vld [vmem:[#allocation5 + $0x38] sm:$0xff]
    %v391 = vld [vmem:[#allocation5 + $0x40] sm:$0xff]
    %v392 = vld [vmem:[#allocation5 + $0x48] sm:$0xff]
    %v393 = vld [vmem:[#allocation5 + $0x50] sm:$0xff]
    %v394 = vld [vmem:[#allocation5 + $0x58] sm:$0xff]
    %v395 = vld [vmem:[#allocation5 + $0x60] sm:$0xff]
    %v396 = vld [vmem:[#allocation5 + $0x68] sm:$0xff]
    %v397 = vld [vmem:[#allocation5 + $0x70] sm:$0xff]
    %v398 = vld [vmem:[#allocation5 + $0x78] sm:$0xff]
    %v399 = vld [vmem:[#allocation5 + $0x80] sm:$0xff]
    %v400 = vld [vmem:[#allocation5 + $0x88] sm:$0xff]
    %v401 = vld [vmem:[#allocation5 + $0x90] sm:$0xff]
    %v402 = vld [vmem:[#allocation5 + $0x98] sm:$0xff]
    %v403 = vld [vmem:[#allocation5 + $0xa0] sm:$0xff]
    %v404 = vld [vmem:[#allocation5 + $0xa8] sm:$0xff]
    %v405 = vld [vmem:[#allocation5 + $0xb0] sm:$0xff]
    %v406 = vld [vmem:[#allocation5 + $0xb8] sm:$0xff]
    %v407 = vld [vmem:[#allocation5 + $0xc0] sm:$0xff]
    %v408 = vld [vmem:[#allocation5 + $0xc8] sm:$0xff]
    %v409 = vld [vmem:[#allocation5 + $0xd0] sm:$0xff]
    %v410 = vld [vmem:[#allocation5 + $0xd8] sm:$0xff]
    %v411 = vld [vmem:[#allocation5 + $0xe0] sm:$0xff]
    %v412 = vld [vmem:[#allocation5 + $0xe8] sm:$0xff]
    %v413 = vld [vmem:[#allocation5 + $0xf0] sm:$0xff]
    %v414 = vld [vmem:[#allocation5 + $0xf8] sm:$0xff]
    %v415 = vld [vmem:[#allocation5 + $0x100] sm:$0xff]
    %v416 = vld [vmem:[#allocation5 + $0x108] sm:$0xff]
    %v418 = vsel %vm218, %v377, 0
    %v421 = vsel %vm218, %v378, 0
    %v424 = vsel %vm218, %v379, 0
    %426 = vmatprep.subr.mxu0 0.0
    %427 = vmatpush1.msra.mxu0 0.0
    %428 = vmatprep.subr.mxu0 0.0
    %429 = vmatpush1.msra.mxu0 0.0
    %430 = vmatprep.subr.mxu0 0.0
    %431 = vmatpush1.msra.mxu0 0.0
    %432 = vmatprep.subr.mxu0 0.0
    %433 = vmatpush1.msra.mxu0 0.0
    %434 = vmatprep.subr.mxu0 0.0
    %435 = vmatpush1.msra.mxu0 0.0
    %436 = vmatprep.subr.mxu0 0.0
    %437 = vmatpush1.msra.mxu0 0.0
    %438 = vmatprep.subr.mxu0 0.0
    %439 = vmatpush1.msra.mxu0 0.0
    %440 = vmatprep.subr.mxu0 0.0
    %441 = vmatpush1.msra.mxu0 0.0
    %442 = vmatprep.subr.mxu0 0.0
    %443 = vmatpush1.msra.mxu0 0.0
    %444 = vmatprep.subr.mxu0 0.0
    %445 = vmatpush1.msra.mxu0 0.0
    %446 = vmatprep.subr.mxu0 0.0
    %447 = vmatpush1.msra.mxu0 0.0
    %448 = vmatprep.subr.mxu0 0.0
    %449 = vmatpush1.msra.mxu0 0.0
    %450 = vmatprep.subr.mxu0 0.0
    %451 = vmatpush1.msra.mxu0 0.0
    %452 = vmatprep.subr.mxu0 0.0
    %453 = vmatpush1.msra.mxu0 0.0
    %454 = vmatprep.subr.mxu0 %v401
    %455 = vmatpush1.msra.mxu0 %v400
    %456 = vmatprep.subr.mxu0 %v384
    %457 = vmatpush1.msra.mxu0 %v383
    %458 = vmatprep.subr.mxu0 0.0
    %459 = vmatpush2.msra.mxu0 0.0
    %460 = vmatprep.subr.mxu0 0.0
    %461 = vmatpush2.msra.mxu0 0.0
    %462 = vmatprep.subr.mxu0 0.0
    %463 = vmatpush2.msra.mxu0 0.0
    %464 = vmatprep.subr.mxu0 0.0
    %465 = vmatpush2.msra.mxu0 0.0
    %466 = vmatprep.subr.mxu0 0.0
    %467 = vmatpush2.msra.mxu0 0.0
    %468 = vmatprep.subr.mxu0 0.0
    %469 = vmatpush2.msra.mxu0 0.0
    %470 = vmatprep.subr.mxu0 0.0
    %471 = vmatpush2.msra.mxu0 0.0
    %472 = vmatprep.subr.mxu0 0.0
    %473 = vmatpush2.msra.mxu0 0.0
    %474 = vmatprep.subr.mxu0 0.0
    %475 = vmatpush2.msra.mxu0 0.0
    %476 = vmatprep.subr.mxu0 0.0
    %477 = vmatpush2.msra.mxu0 0.0
    %478 = vmatprep.subr.mxu0 0.0
    %479 = vmatpush2.msra.mxu0 0.0
    %480 = vmatprep.subr.mxu0 0.0
    %481 = vmatpush2.msra.mxu0 0.0
    %482 = vmatprep.subr.mxu0 0.0
    %483 = vmatpush2.msra.mxu0 0.0
    %484 = vmatprep.subr.mxu0 0.0
    %485 = vmatpush2.msra.mxu0 0.0
    %486 = vmatprep.subr.mxu0 0.0
    %487 = vmatpush2.msra.mxu0 0.0
    %488 = vmatprep.subr.mxu0 0.0
    %489 = vmatpush2.msra.mxu0 0.0
    %490 = vmatprep.mubr.f32.mxu0 0.0
    %491 = vmatmul.mubr.f32.gmra.mxu0 %v418
    %v492 = vpop.f32.mrf.mxu0
    %v493 = vadd.f32 0.0, %v492
    %v494 = vpop.f32.mrf.mxu0
    %v495 = vadd.f32 0.0, %v494
    %496 = vmatprep.mubr.f32.mxu0 0.0
    %497 = vmatmul.mubr.f32.gmra.mxu0 %v421
    %v498 = vpop.f32.mrf.mxu0
    %v499 = vadd.f32 0.0, %v498
    %v500 = vpop.f32.mrf.mxu0
    %v501 = vadd.f32 0.0, %v500
    %502 = vmatprep.mubr.f32.mxu0 0.0
    %503 = vmatmul.mubr.f32.gmra.mxu0 %v424
    %v504 = vpop.f32.mrf.mxu0
    %v505 = vadd.f32 0.0, %v504
    %v506 = vpop.f32.mrf.mxu0
    %v507 = vadd.f32 0.0, %v506
    %508 = vdwg.mxu0
    %509 = vmatprep.subr.mxu0 0.0
    %510 = vmatpush1.msra.mxu0 0.0
    %511 = vmatprep.subr.mxu0 0.0
    %512 = vmatpush1.msra.mxu0 0.0
    %513 = vmatprep.subr.mxu0 0.0
    %514 = vmatpush1.msra.mxu0 0.0
    %515 = vmatprep.subr.mxu0 0.0
    %516 = vmatpush1.msra.mxu0 0.0
    %517 = vmatprep.subr.mxu0 0.0
    %518 = vmatpush1.msra.mxu0 0.0
    %519 = vmatprep.subr.mxu0 0.0
    %520 = vmatpush1.msra.mxu0 0.0
    %521 = vmatprep.subr.mxu0 0.0
    %522 = vmatpush1.msra.mxu0 0.0
    %523 = vmatprep.subr.mxu0 0.0
    %524 = vmatpush1.msra.mxu0 0.0
    %525 = vmatprep.subr.mxu0 0.0
    %526 = vmatpush1.msra.mxu0 0.0
    %527 = vmatprep.subr.mxu0 0.0
    %528 = vmatpush1.msra.mxu0 0.0
    %529 = vmatprep.subr.mxu0 0.0
    %530 = vmatpush1.msra.mxu0 0.0
    %531 = vmatprep.subr.mxu0 0.0
    %532 = vmatpush1.msra.mxu0 0.0
    %533 = vmatprep.subr.mxu0 0.0
    %534 = vmatpush1.msra.mxu0 0.0
    %535 = vmatprep.subr.mxu0 0.0
    %536 = vmatpush1.msra.mxu0 0.0
    %537 = vmatprep.subr.mxu0 %v403
    %538 = vmatpush1.msra.mxu0 %v402
    %539 = vmatprep.subr.mxu0 %v386
    %540 = vmatpush1.msra.mxu0 %v385
    %541 = vmatprep.subr.mxu0 0.0
    %542 = vmatpush2.msra.mxu0 0.0
    %543 = vmatprep.subr.mxu0 0.0
    %544 = vmatpush2.msra.mxu0 0.0
    %545 = vmatprep.subr.mxu0 0.0
    %546 = vmatpush2.msra.mxu0 0.0
    %547 = vmatprep.subr.mxu0 0.0
    %548 = vmatpush2.msra.mxu0 0.0
    %549 = vmatprep.subr.mxu0 0.0
    %550 = vmatpush2.msra.mxu0 0.0
    %551 = vmatprep.subr.mxu0 0.0
    %552 = vmatpush2.msra.mxu0 0.0
    %553 = vmatprep.subr.mxu0 0.0
    %554 = vmatpush2.msra.mxu0 0.0
    %555 = vmatprep.subr.mxu0 0.0
    %556 = vmatpush2.msra.mxu0 0.0
    %557 = vmatprep.subr.mxu0 0.0
    %558 = vmatpush2.msra.mxu0 0.0
    %559 = vmatprep.subr.mxu0 0.0
    %560 = vmatpush2.msra.mxu0 0.0
    %561 = vmatprep.subr.mxu0 0.0
    %562 = vmatpush2.msra.mxu0 0.0
    %563 = vmatprep.subr.mxu0 0.0
    %564 = vmatpush2.msra.mxu0 0.0
    %565 = vmatprep.subr.mxu0 0.0
    %566 = vmatpush2.msra.mxu0 0.0
    %567 = vmatprep.subr.mxu0 0.0
    %568 = vmatpush2.msra.mxu0 0.0
    %569 = vmatprep.subr.mxu0 0.0
    %570 = vmatpush2.msra.mxu0 0.0
    %571 = vmatprep.subr.mxu0 0.0
    %572 = vmatpush2.msra.mxu0 0.0
    %573 = vmatprep.mubr.f32.mxu0 0.0
    %574 = vmatmul.mubr.f32.gmra.mxu0 %v418
    %v575 = vpop.f32.mrf.mxu0
    %v576 = vadd.f32 0.0, %v575
    %v577 = vpop.f32.mrf.mxu0
    %v578 = vadd.f32 0.0, %v577
    %579 = vmatprep.mubr.f32.mxu0 0.0
    %580 = vmatmul.mubr.f32.gmra.mxu0 %v421
    %v581 = vpop.f32.mrf.mxu0
    %v582 = vadd.f32 0.0, %v581
    %v583 = vpop.f32.mrf.mxu0
    %v584 = vadd.f32 0.0, %v583
    %585 = vmatprep.mubr.f32.mxu0 0.0
    %586 = vmatmul.mubr.f32.gmra.mxu0 %v424
    %v587 = vpop.f32.mrf.mxu0
    %v588 = vadd.f32 0.0, %v587
    %v589 = vpop.f32.mrf.mxu0
    %v590 = vadd.f32 0.0, %v589
    %591 = vdwg.mxu0
    %592 = vmatprep.subr.mxu0 0.0
    %593 = vmatpush1.msra.mxu0 0.0
    %594 = vmatprep.subr.mxu0 0.0
    %595 = vmatpush1.msra.mxu0 0.0
    %596 = vmatprep.subr.mxu0 0.0
    %597 = vmatpush1.msra.mxu0 0.0
    %598 = vmatprep.subr.mxu0 0.0
    %599 = vmatpush1.msra.mxu0 0.0
    %600 = vmatprep.subr.mxu0 0.0
    %601 = vmatpush1.msra.mxu0 0.0
    %602 = vmatprep.subr.mxu0 0.0
    %603 = vmatpush1.msra.mxu0 0.0
    %604 = vmatprep.subr.mxu0 0.0
    %605 = vmatpush1.msra.mxu0 0.0
    %606 = vmatprep.subr.mxu0 0.0
    %607 = vmatpush1.msra.mxu0 0.0
    %608 = vmatprep.subr.mxu0 0.0
    %609 = vmatpush1.msra.mxu0 0.0
    %610 = vmatprep.subr.mxu0 0.0
    %611 = vmatpush1.msra.mxu0 0.0
    %612 = vmatprep.subr.mxu0 0.0
    %613 = vmatpush1.msra.mxu0 0.0
    %614 = vmatprep.subr.mxu0 0.0
    %615 = vmatpush1.msra.mxu0 0.0
    %616 = vmatprep.subr.mxu0 0.0
    %617 = vmatpush1.msra.mxu0 0.0
    %618 = vmatprep.subr.mxu0 0.0
    %619 = vmatpush1.msra.mxu0 0.0
    %620 = vmatprep.subr.mxu0 %v405
    %621 = vmatpush1.msra.mxu0 %v404
    %622 = vmatprep.subr.mxu0 %v388
    %623 = vmatpush1.msra.mxu0 %v387
    %624 = vmatprep.subr.mxu0 0.0
    %625 = vmatpush2.msra.mxu0 0.0
    %626 = vmatprep.subr.mxu0 0.0
    %627 = vmatpush2.msra.mxu0 0.0
    %628 = vmatprep.subr.mxu0 0.0
    %629 = vmatpush2.msra.mxu0 0.0
    %630 = vmatprep.subr.mxu0 0.0
    %631 = vmatpush2.msra.mxu0 0.0
    %632 = vmatprep.subr.mxu0 0.0
    %633 = vmatpush2.msra.mxu0 0.0
    %634 = vmatprep.subr.mxu0 0.0
    %635 = vmatpush2.msra.mxu0 0.0
    %636 = vmatprep.subr.mxu0 0.0
    %637 = vmatpush2.msra.mxu0 0.0
    %638 = vmatprep.subr.mxu0 0.0
    %639 = vmatpush2.msra.mxu0 0.0
    %640 = vmatprep.subr.mxu0 0.0
    %641 = vmatpush2.msra.mxu0 0.0
    %642 = vmatprep.subr.mxu0 0.0
    %643 = vmatpush2.msra.mxu0 0.0
    %644 = vmatprep.subr.mxu0 0.0
    %645 = vmatpush2.msra.mxu0 0.0
    %646 = vmatprep.subr.mxu0 0.0
    %647 = vmatpush2.msra.mxu0 0.0
    %648 = vmatprep.subr.mxu0 0.0
    %649 = vmatpush2.msra.mxu0 0.0
    %650 = vmatprep.subr.mxu0 0.0
    %651 = vmatpush2.msra.mxu0 0.0
    %652 = vmatprep.subr.mxu0 0.0
    %653 = vmatpush2.msra.mxu0 0.0
    %654 = vmatprep.subr.mxu0 0.0
    %655 = vmatpush2.msra.mxu0 0.0
    %656 = vmatprep.mubr.f32.mxu0 0.0
    %657 = vmatmul.mubr.f32.gmra.mxu0 %v418
    %v658 = vpop.f32.mrf.mxu0
    %v659 = vadd.f32 0.0, %v658
    %v660 = vpop.f32.mrf.mxu0
    %v661 = vadd.f32 0.0, %v660
    %662 = vmatprep.mubr.f32.mxu0 0.0
    %663 = vmatmul.mubr.f32.gmra.mxu0 %v421
    %v664 = vpop.f32.mrf.mxu0
    %v665 = vadd.f32 0.0, %v664
    %v666 = vpop.f32.mrf.mxu0
    %v667 = vadd.f32 0.0, %v666
    %668 = vmatprep.mubr.f32.mxu0 0.0
    %669 = vmatmul.mubr.f32.gmra.mxu0 %v424
    %v670 = vpop.f32.mrf.mxu0
    %v671 = vadd.f32 0.0, %v670
    %v672 = vpop.f32.mrf.mxu0
    %v673 = vadd.f32 0.0, %v672
    %674 = vdwg.mxu0
    %675 = vmatprep.subr.mxu0 0.0
    %676 = vmatpush1.msra.mxu0 0.0
    %677 = vmatprep.subr.mxu0 0.0
    %678 = vmatpush1.msra.mxu0 0.0
    %679 = vmatprep.subr.mxu0 0.0
    %680 = vmatpush1.msra.mxu0 0.0
    %681 = vmatprep.subr.mxu0 0.0
    %682 = vmatpush1.msra.mxu0 0.0
    %683 = vmatprep.subr.mxu0 0.0
    %684 = vmatpush1.msra.mxu0 0.0
    %685 = vmatprep.subr.mxu0 0.0
    %686 = vmatpush1.msra.mxu0 0.0
    %687 = vmatprep.subr.mxu0 0.0
    %688 = vmatpush1.msra.mxu0 0.0
    %689 = vmatprep.subr.mxu0 0.0
    %690 = vmatpush1.msra.mxu0 0.0
    %691 = vmatprep.subr.mxu0 0.0
    %692 = vmatpush1.msra.mxu0 0.0
    %693 = vmatprep.subr.mxu0 0.0
    %694 = vmatpush1.msra.mxu0 0.0
    %695 = vmatprep.subr.mxu0 0.0
    %696 = vmatpush1.msra.mxu0 0.0
    %697 = vmatprep.subr.mxu0 0.0
    %698 = vmatpush1.msra.mxu0 0.0
    %699 = vmatprep.subr.mxu0 0.0
    %700 = vmatpush1.msra.mxu0 0.0
    %701 = vmatprep.subr.mxu0 0.0
    %702 = vmatpush1.msra.mxu0 0.0
    %703 = vmatprep.subr.mxu0 %v407
    %704 = vmatpush1.msra.mxu0 %v406
    %705 = vmatprep.subr.mxu0 %v390
    %706 = vmatpush1.msra.mxu0 %v389
    %707 = vmatprep.subr.mxu0 0.0
    %708 = vmatpush2.msra.mxu0 0.0
    %709 = vmatprep.subr.mxu0 0.0
    %710 = vmatpush2.msra.mxu0 0.0
    %711 = vmatprep.subr.mxu0 0.0
    %712 = vmatpush2.msra.mxu0 0.0
    %713 = vmatprep.subr.mxu0 0.0
    %714 = vmatpush2.msra.mxu0 0.0
    %715 = vmatprep.subr.mxu0 0.0
    %716 = vmatpush2.msra.mxu0 0.0
    %717 = vmatprep.subr.mxu0 0.0
    %718 = vmatpush2.msra.mxu0 0.0
    %719 = vmatprep.subr.mxu0 0.0
    %720 = vmatpush2.msra.mxu0 0.0
    %721 = vmatprep.subr.mxu0 0.0
    %722 = vmatpush2.msra.mxu0 0.0
    %723 = vmatprep.subr.mxu0 0.0
    %724 = vmatpush2.msra.mxu0 0.0
    %725 = vmatprep.subr.mxu0 0.0
    %726 = vmatpush2.msra.mxu0 0.0
    %727 = vmatprep.subr.mxu0 0.0
    %728 = vmatpush2.msra.mxu0 0.0
    %729 = vmatprep.subr.mxu0 0.0
    %730 = vmatpush2.msra.mxu0 0.0
    %731 = vmatprep.subr.mxu0 0.0
    %732 = vmatpush2.msra.mxu0 0.0
    %733 = vmatprep.subr.mxu0 0.0
    %734 = vmatpush2.msra.mxu0 0.0
    %735 = vmatprep.subr.mxu0 0.0
    %736 = vmatpush2.msra.mxu0 0.0
    %737 = vmatprep.subr.mxu0 0.0
    %738 = vmatpush2.msra.mxu0 0.0
    %739 = vmatprep.mubr.f32.mxu0 0.0
    %740 = vmatmul.mubr.f32.gmra.mxu0 %v418
    %v741 = vpop.f32.mrf.mxu0
    %v742 = vadd.f32 0.0, %v741
    %v743 = vpop.f32.mrf.mxu0
    %v744 = vadd.f32 0.0, %v743
    %745 = vmatprep.mubr.f32.mxu0 0.0
    %746 = vmatmul.mubr.f32.gmra.mxu0 %v421
    %v747 = vpop.f32.mrf.mxu0
    %v748 = vadd.f32 0.0, %v747
    %v749 = vpop.f32.mrf.mxu0
    %v750 = vadd.f32 0.0, %v749
    %751 = vmatprep.mubr.f32.mxu0 0.0
    %752 = vmatmul.mubr.f32.gmra.mxu0 %v424
    %v753 = vpop.f32.mrf.mxu0
    %v754 = vadd.f32 0.0, %v753
    %v755 = vpop.f32.mrf.mxu0
    %v756 = vadd.f32 0.0, %v755
    %757 = vdwg.mxu0
    %758 = vmatprep.subr.mxu0 0.0
    %759 = vmatpush1.msra.mxu0 0.0
    %760 = vmatprep.subr.mxu0 0.0
    %761 = vmatpush1.msra.mxu0 0.0
    %762 = vmatprep.subr.mxu0 0.0
    %763 = vmatpush1.msra.mxu0 0.0
    %764 = vmatprep.subr.mxu0 0.0
    %765 = vmatpush1.msra.mxu0 0.0
    %766 = vmatprep.subr.mxu0 0.0
    %767 = vmatpush1.msra.mxu0 0.0
    %768 = vmatprep.subr.mxu0 0.0
    %769 = vmatpush1.msra.mxu0 0.0
    %770 = vmatprep.subr.mxu0 0.0
    %771 = vmatpush1.msra.mxu0 0.0
    %772 = vmatprep.subr.mxu0 0.0
    %773 = vmatpush1.msra.mxu0 0.0
    %774 = vmatprep.subr.mxu0 0.0
    %775 = vmatpush1.msra.mxu0 0.0
    %776 = vmatprep.subr.mxu0 0.0
    %777 = vmatpush1.msra.mxu0 0.0
    %778 = vmatprep.subr.mxu0 0.0
    %779 = vmatpush1.msra.mxu0 0.0
    %780 = vmatprep.subr.mxu0 0.0
    %781 = vmatpush1.msra.mxu0 0.0
    %782 = vmatprep.subr.mxu0 0.0
    %783 = vmatpush1.msra.mxu0 0.0
    %784 = vmatprep.subr.mxu0 0.0
    %785 = vmatpush1.msra.mxu0 0.0
    %786 = vmatprep.subr.mxu0 %v409
    %787 = vmatpush1.msra.mxu0 %v408
    %788 = vmatprep.subr.mxu0 %v392
    %789 = vmatpush1.msra.mxu0 %v391
    %790 = vmatprep.subr.mxu0 0.0
    %791 = vmatpush2.msra.mxu0 0.0
    %792 = vmatprep.subr.mxu0 0.0
    %793 = vmatpush2.msra.mxu0 0.0
    %794 = vmatprep.subr.mxu0 0.0
    %795 = vmatpush2.msra.mxu0 0.0
    %796 = vmatprep.subr.mxu0 0.0
    %797 = vmatpush2.msra.mxu0 0.0
    %798 = vmatprep.subr.mxu0 0.0
    %799 = vmatpush2.msra.mxu0 0.0
    %800 = vmatprep.subr.mxu0 0.0
    %801 = vmatpush2.msra.mxu0 0.0
    %802 = vmatprep.subr.mxu0 0.0
    %803 = vmatpush2.msra.mxu0 0.0
    %804 = vmatprep.subr.mxu0 0.0
    %805 = vmatpush2.msra.mxu0 0.0
    %806 = vmatprep.subr.mxu0 0.0
    %807 = vmatpush2.msra.mxu0 0.0
    %808 = vmatprep.subr.mxu0 0.0
    %809 = vmatpush2.msra.mxu0 0.0
    %810 = vmatprep.subr.mxu0 0.0
    %811 = vmatpush2.msra.mxu0 0.0
    %812 = vmatprep.subr.mxu0 0.0
    %813 = vmatpush2.msra.mxu0 0.0
    %814 = vmatprep.subr.mxu0 0.0
    %815 = vmatpush2.msra.mxu0 0.0
    %816 = vmatprep.subr.mxu0 0.0
    %817 = vmatpush2.msra.mxu0 0.0
    %818 = vmatprep.subr.mxu0 0.0
    %819 = vmatpush2.msra.mxu0 0.0
    %820 = vmatprep.subr.mxu0 0.0
    %821 = vmatpush2.msra.mxu0 0.0
    %822 = vmatprep.mubr.f32.mxu0 0.0
    %823 = vmatmul.mubr.f32.gmra.mxu0 %v418
    %v824 = vpop.f32.mrf.mxu0
    %v825 = vadd.f32 0.0, %v824
    %v826 = vpop.f32.mrf.mxu0
    %v827 = vadd.f32 0.0, %v826
    %828 = vmatprep.mubr.f32.mxu0 0.0
    %829 = vmatmul.mubr.f32.gmra.mxu0 %v421
    %v830 = vpop.f32.mrf.mxu0
    %v831 = vadd.f32 0.0, %v830
    %v832 = vpop.f32.mrf.mxu0
    %v833 = vadd.f32 0.0, %v832
    %834 = vmatprep.mubr.f32.mxu0 0.0
    %835 = vmatmul.mubr.f32.gmra.mxu0 %v424
    %v836 = vpop.f32.mrf.mxu0
    %v837 = vadd.f32 0.0, %v836
    %v838 = vpop.f32.mrf.mxu0
    %v839 = vadd.f32 0.0, %v838
    %840 = vdwg.mxu0
    %841 = vmatprep.subr.mxu0 0.0
    %842 = vmatpush1.msra.mxu0 0.0
    %843 = vmatprep.subr.mxu0 0.0
    %844 = vmatpush1.msra.mxu0 0.0
    %845 = vmatprep.subr.mxu0 0.0
    %846 = vmatpush1.msra.mxu0 0.0
    %847 = vmatprep.subr.mxu0 0.0
    %848 = vmatpush1.msra.mxu0 0.0
    %849 = vmatprep.subr.mxu0 0.0
    %850 = vmatpush1.msra.mxu0 0.0
    %851 = vmatprep.subr.mxu0 0.0
    %852 = vmatpush1.msra.mxu0 0.0
    %853 = vmatprep.subr.mxu0 0.0
    %854 = vmatpush1.msra.mxu0 0.0
    %855 = vmatprep.subr.mxu0 0.0
    %856 = vmatpush1.msra.mxu0 0.0
    %857 = vmatprep.subr.mxu0 0.0
    %858 = vmatpush1.msra.mxu0 0.0
    %859 = vmatprep.subr.mxu0 0.0
    %860 = vmatpush1.msra.mxu0 0.0
    %861 = vmatprep.subr.mxu0 0.0
    %862 = vmatpush1.msra.mxu0 0.0
    %863 = vmatprep.subr.mxu0 0.0
    %864 = vmatpush1.msra.mxu0 0.0
    %865 = vmatprep.subr.mxu0 0.0
    %866 = vmatpush1.msra.mxu0 0.0
    %867 = vmatprep.subr.mxu0 0.0
    %868 = vmatpush1.msra.mxu0 0.0
    %869 = vmatprep.subr.mxu0 %v411
    %870 = vmatpush1.msra.mxu0 %v410
    %871 = vmatprep.subr.mxu0 %v394
    %872 = vmatpush1.msra.mxu0 %v393
    %873 = vmatprep.subr.mxu0 0.0
    %874 = vmatpush2.msra.mxu0 0.0
    %875 = vmatprep.subr.mxu0 0.0
    %876 = vmatpush2.msra.mxu0 0.0
    %877 = vmatprep.subr.mxu0 0.0
    %878 = vmatpush2.msra.mxu0 0.0
    %879 = vmatprep.subr.mxu0 0.0
    %880 = vmatpush2.msra.mxu0 0.0
    %881 = vmatprep.subr.mxu0 0.0
    %882 = vmatpush2.msra.mxu0 0.0
    %883 = vmatprep.subr.mxu0 0.0
    %884 = vmatpush2.msra.mxu0 0.0
    %885 = vmatprep.subr.mxu0 0.0
    %886 = vmatpush2.msra.mxu0 0.0
    %887 = vmatprep.subr.mxu0 0.0
    %888 = vmatpush2.msra.mxu0 0.0
    %889 = vmatprep.subr.mxu0 0.0
    %890 = vmatpush2.msra.mxu0 0.0
    %891 = vmatprep.subr.mxu0 0.0
    %892 = vmatpush2.msra.mxu0 0.0
    %893 = vmatprep.subr.mxu0 0.0
    %894 = vmatpush2.msra.mxu0 0.0
    %895 = vmatprep.subr.mxu0 0.0
    %896 = vmatpush2.msra.mxu0 0.0
    %897 = vmatprep.subr.mxu0 0.0
    %898 = vmatpush2.msra.mxu0 0.0
    %899 = vmatprep.subr.mxu0 0.0
    %900 = vmatpush2.msra.mxu0 0.0
    %901 = vmatprep.subr.mxu0 0.0
    %902 = vmatpush2.msra.mxu0 0.0
    %903 = vmatprep.subr.mxu0 0.0
    %904 = vmatpush2.msra.mxu0 0.0
    %905 = vmatprep.mubr.f32.mxu0 0.0
    %906 = vmatmul.mubr.f32.gmra.mxu0 %v418
    %v907 = vpop.f32.mrf.mxu0
    %v908 = vadd.f32 0.0, %v907
    %v909 = vpop.f32.mrf.mxu0
    %v910 = vadd.f32 0.0, %v909
    %911 = vmatprep.mubr.f32.mxu0 0.0
    %912 = vmatmul.mubr.f32.gmra.mxu0 %v421
    %v913 = vpop.f32.mrf.mxu0
    %v914 = vadd.f32 0.0, %v913
    %v915 = vpop.f32.mrf.mxu0
    %v916 = vadd.f32 0.0, %v915
    %917 = vmatprep.mubr.f32.mxu0 0.0
    %918 = vmatmul.mubr.f32.gmra.mxu0 %v424
    %v919 = vpop.f32.mrf.mxu0
    %v920 = vadd.f32 0.0, %v919
    %v921 = vpop.f32.mrf.mxu0
    %v922 = vadd.f32 0.0, %v921
    %923 = vdwg.mxu0
    %924 = vmatprep.subr.mxu0 0.0
    %925 = vmatpush1.msra.mxu0 0.0
    %926 = vmatprep.subr.mxu0 0.0
    %927 = vmatpush1.msra.mxu0 0.0
    %928 = vmatprep.subr.mxu0 0.0
    %929 = vmatpush1.msra.mxu0 0.0
    %930 = vmatprep.subr.mxu0 0.0
    %931 = vmatpush1.msra.mxu0 0.0
    %932 = vmatprep.subr.mxu0 0.0
    %933 = vmatpush1.msra.mxu0 0.0
    %934 = vmatprep.subr.mxu0 0.0
    %935 = vmatpush1.msra.mxu0 0.0
    %936 = vmatprep.subr.mxu0 0.0
    %937 = vmatpush1.msra.mxu0 0.0
    %938 = vmatprep.subr.mxu0 0.0
    %939 = vmatpush1.msra.mxu0 0.0
    %940 = vmatprep.subr.mxu0 0.0
    %941 = vmatpush1.msra.mxu0 0.0
    %942 = vmatprep.subr.mxu0 0.0
    %943 = vmatpush1.msra.mxu0 0.0
    %944 = vmatprep.subr.mxu0 0.0
    %945 = vmatpush1.msra.mxu0 0.0
    %946 = vmatprep.subr.mxu0 0.0
    %947 = vmatpush1.msra.mxu0 0.0
    %948 = vmatprep.subr.mxu0 0.0
    %949 = vmatpush1.msra.mxu0 0.0
    %950 = vmatprep.subr.mxu0 0.0
    %951 = vmatpush1.msra.mxu0 0.0
    %952 = vmatprep.subr.mxu0 %v413
    %953 = vmatpush1.msra.mxu0 %v412
    %954 = vmatprep.subr.mxu0 %v396
    %955 = vmatpush1.msra.mxu0 %v395
    %956 = vmatprep.subr.mxu0 0.0
    %957 = vmatpush2.msra.mxu0 0.0
    %958 = vmatprep.subr.mxu0 0.0
    %959 = vmatpush2.msra.mxu0 0.0
    %960 = vmatprep.subr.mxu0 0.0
    %961 = vmatpush2.msra.mxu0 0.0
    %962 = vmatprep.subr.mxu0 0.0
    %963 = vmatpush2.msra.mxu0 0.0
    %964 = vmatprep.subr.mxu0 0.0
    %965 = vmatpush2.msra.mxu0 0.0
    %966 = vmatprep.subr.mxu0 0.0
    %967 = vmatpush2.msra.mxu0 0.0
    %968 = vmatprep.subr.mxu0 0.0
    %969 = vmatpush2.msra.mxu0 0.0
    %970 = vmatprep.subr.mxu0 0.0
    %971 = vmatpush2.msra.mxu0 0.0
    %972 = vmatprep.subr.mxu0 0.0
    %973 = vmatpush2.msra.mxu0 0.0
    %974 = vmatprep.subr.mxu0 0.0
    %975 = vmatpush2.msra.mxu0 0.0
    %976 = vmatprep.subr.mxu0 0.0
    %977 = vmatpush2.msra.mxu0 0.0
    %978 = vmatprep.subr.mxu0 0.0
    %979 = vmatpush2.msra.mxu0 0.0
    %980 = vmatprep.subr.mxu0 0.0
    %981 = vmatpush2.msra.mxu0 0.0
    %982 = vmatprep.subr.mxu0 0.0
    %983 = vmatpush2.msra.mxu0 0.0
    %984 = vmatprep.subr.mxu0 0.0
    %985 = vmatpush2.msra.mxu0 0.0
    %986 = vmatprep.subr.mxu0 0.0
    %987 = vmatpush2.msra.mxu0 0.0
    %988 = vmatprep.mubr.f32.mxu0 0.0
    %989 = vmatmul.mubr.f32.gmra.mxu0 %v418
    %v990 = vpop.f32.mrf.mxu0
    %v991 = vadd.f32 0.0, %v990
    %v992 = vpop.f32.mrf.mxu0
    %v993 = vadd.f32 0.0, %v992
    %994 = vmatprep.mubr.f32.mxu0 0.0
    %995 = vmatmul.mubr.f32.gmra.mxu0 %v421
    %v996 = vpop.f32.mrf.mxu0
    %v997 = vadd.f32 0.0, %v996
    %v998 = vpop.f32.mrf.mxu0
    %v999 = vadd.f32 0.0, %v998
    %1000 = vmatprep.mubr.f32.mxu0 0.0
    %1001 = vmatmul.mubr.f32.gmra.mxu0 %v424
    %v1002 = vpop.f32.mrf.mxu0
    %v1003 = vadd.f32 0.0, %v1002
    %v1004 = vpop.f32.mrf.mxu0
    %v1005 = vadd.f32 0.0, %v1004
    %1006 = vdwg.mxu0
    %1007 = vmatprep.subr.mxu0 0.0
    %1008 = vmatpush1.msra.mxu0 0.0
    %1009 = vmatprep.subr.mxu0 0.0
    %1010 = vmatpush1.msra.mxu0 0.0
    %1011 = vmatprep.subr.mxu0 0.0
    %1012 = vmatpush1.msra.mxu0 0.0
    %1013 = vmatprep.subr.mxu0 0.0
    %1014 = vmatpush1.msra.mxu0 0.0
    %1015 = vmatprep.subr.mxu0 0.0
    %1016 = vmatpush1.msra.mxu0 0.0
    %1017 = vmatprep.subr.mxu0 0.0
    %1018 = vmatpush1.msra.mxu0 0.0
    %1019 = vmatprep.subr.mxu0 0.0
    %1020 = vmatpush1.msra.mxu0 0.0
    %1021 = vmatprep.subr.mxu0 0.0
    %1022 = vmatpush1.msra.mxu0 0.0
    %1023 = vmatprep.subr.mxu0 0.0
    %1024 = vmatpush1.msra.mxu0 0.0
    %1025 = vmatprep.subr.mxu0 0.0
    %1026 = vmatpush1.msra.mxu0 0.0
    %1027 = vmatprep.subr.mxu0 0.0
    %1028 = vmatpush1.msra.mxu0 0.0
    %1029 = vmatprep.subr.mxu0 0.0
    %1030 = vmatpush1.msra.mxu0 0.0
    %1031 = vmatprep.subr.mxu0 0.0
    %1032 = vmatpush1.msra.mxu0 0.0
    %1033 = vmatprep.subr.mxu0 0.0
    %1034 = vmatpush1.msra.mxu0 0.0
    %1035 = vmatprep.subr.mxu0 %v415
    %1036 = vmatpush1.msra.mxu0 %v414
    %1037 = vmatprep.subr.mxu0 %v398
    %1038 = vmatpush1.msra.mxu0 %v397
    %1039 = vmatprep.subr.mxu0 0.0
    %1040 = vmatpush2.msra.mxu0 0.0
    %1041 = vmatprep.subr.mxu0 0.0
    %1042 = vmatpush2.msra.mxu0 0.0
    %1043 = vmatprep.subr.mxu0 0.0
    %1044 = vmatpush2.msra.mxu0 0.0
    %1045 = vmatprep.subr.mxu0 0.0
    %1046 = vmatpush2.msra.mxu0 0.0
    %1047 = vmatprep.subr.mxu0 0.0
    %1048 = vmatpush2.msra.mxu0 0.0
    %1049 = vmatprep.subr.mxu0 0.0
    %1050 = vmatpush2.msra.mxu0 0.0
    %1051 = vmatprep.subr.mxu0 0.0
    %1052 = vmatpush2.msra.mxu0 0.0
    %1053 = vmatprep.subr.mxu0 0.0
    %1054 = vmatpush2.msra.mxu0 0.0
    %1055 = vmatprep.subr.mxu0 0.0
    %1056 = vmatpush2.msra.mxu0 0.0
    %1057 = vmatprep.subr.mxu0 0.0
    %1058 = vmatpush2.msra.mxu0 0.0
    %1059 = vmatprep.subr.mxu0 0.0
    %1060 = vmatpush2.msra.mxu0 0.0
    %1061 = vmatprep.subr.mxu0 0.0
    %1062 = vmatpush2.msra.mxu0 0.0
    %1063 = vmatprep.subr.mxu0 0.0
    %1064 = vmatpush2.msra.mxu0 0.0
    %1065 = vmatprep.subr.mxu0 0.0
    %1066 = vmatpush2.msra.mxu0 0.0
    %1067 = vmatprep.subr.mxu0 0.0
    %1068 = vmatpush2.msra.mxu0 0.0
    %1069 = vmatprep.subr.mxu0 0.0
    %1070 = vmatpush2.msra.mxu0 0.0
    %1071 = vmatprep.mubr.f32.mxu0 0.0
    %1072 = vmatmul.mubr.f32.gmra.mxu0 %v418
    %v1073 = vpop.f32.mrf.mxu0
    %v1074 = vadd.f32 0.0, %v1073
    %v1075 = vpop.f32.mrf.mxu0
    %v1076 = vadd.f32 0.0, %v1075
    %1077 = vmatprep.mubr.f32.mxu0 0.0
    %1078 = vmatmul.mubr.f32.gmra.mxu0 %v421
    %v1079 = vpop.f32.mrf.mxu0
    %v1080 = vadd.f32 0.0, %v1079
    %v1081 = vpop.f32.mrf.mxu0
    %v1082 = vadd.f32 0.0, %v1081
    %1083 = vmatprep.mubr.f32.mxu0 0.0
    %1084 = vmatmul.mubr.f32.gmra.mxu0 %v424
    %v1085 = vpop.f32.mrf.mxu0
    %v1086 = vadd.f32 0.0, %v1085
    %v1087 = vpop.f32.mrf.mxu0
    %v1088 = vadd.f32 0.0, %v1087
    %1089 = vdwg.mxu0
    %1090 = vmatprep.subr.mxu0 0.0
    %1091 = vmatpush1.msra.mxu0 0.0
    %1092 = vmatprep.subr.mxu0 0.0
    %1093 = vmatpush1.msra.mxu0 0.0
    %1094 = vmatprep.subr.mxu0 0.0
    %1095 = vmatpush1.msra.mxu0 0.0
    %1096 = vmatprep.subr.mxu0 0.0
    %1097 = vmatpush1.msra.mxu0 0.0
    %1098 = vmatprep.subr.mxu0 0.0
    %1099 = vmatpush1.msra.mxu0 0.0
    %1100 = vmatprep.subr.mxu0 0.0
    %1101 = vmatpush1.msra.mxu0 0.0
    %1102 = vmatprep.subr.mxu0 0.0
    %1103 = vmatpush1.msra.mxu0 0.0
    %1104 = vmatprep.subr.mxu0 0.0
    %1105 = vmatpush1.msra.mxu0 0.0
    %1106 = vmatprep.subr.mxu0 0.0
    %1107 = vmatpush1.msra.mxu0 0.0
    %1108 = vmatprep.subr.mxu0 0.0
    %1109 = vmatpush1.msra.mxu0 0.0
    %1110 = vmatprep.subr.mxu0 0.0
    %1111 = vmatpush1.msra.mxu0 0.0
    %1112 = vmatprep.subr.mxu0 0.0
    %1113 = vmatpush1.msra.mxu0 0.0
    %1114 = vmatprep.subr.mxu0 0.0
    %1115 = vmatpush1.msra.mxu0 0.0
    %1116 = vmatprep.subr.mxu0 0.0
    %1117 = vmatpush1.msra.mxu0 0.0
    %1118 = vmatprep.subr.mxu0 0.0
    %1119 = vmatpush1.msra.mxu0 %v416
    %1120 = vmatprep.subr.mxu0 0.0
    %1121 = vmatpush1.msra.mxu0 %v399
    %1122 = vmatprep.subr.mxu0 0.0
    %1123 = vmatpush2.msra.mxu0 0.0
    %1124 = vmatprep.subr.mxu0 0.0
    %1125 = vmatpush2.msra.mxu0 0.0
    %1126 = vmatprep.subr.mxu0 0.0
    %1127 = vmatpush2.msra.mxu0 0.0
    %1128 = vmatprep.subr.mxu0 0.0
    %1129 = vmatpush2.msra.mxu0 0.0
    %1130 = vmatprep.subr.mxu0 0.0
    %1131 = vmatpush2.msra.mxu0 0.0
    %1132 = vmatprep.subr.mxu0 0.0
    %1133 = vmatpush2.msra.mxu0 0.0
    %1134 = vmatprep.subr.mxu0 0.0
    %1135 = vmatpush2.msra.mxu0 0.0
    %1136 = vmatprep.subr.mxu0 0.0
    %1137 = vmatpush2.msra.mxu0 0.0
    %1138 = vmatprep.subr.mxu0 0.0
    %1139 = vmatpush2.msra.mxu0 0.0
    %1140 = vmatprep.subr.mxu0 0.0
    %1141 = vmatpush2.msra.mxu0 0.0
    %1142 = vmatprep.subr.mxu0 0.0
    %1143 = vmatpush2.msra.mxu0 0.0
    %1144 = vmatprep.subr.mxu0 0.0
    %1145 = vmatpush2.msra.mxu0 0.0
    %1146 = vmatprep.subr.mxu0 0.0
    %1147 = vmatpush2.msra.mxu0 0.0
    %1148 = vmatprep.subr.mxu0 0.0
    %1149 = vmatpush2.msra.mxu0 0.0
    %1150 = vmatprep.subr.mxu0 0.0
    %1151 = vmatpush2.msra.mxu0 0.0
    %1152 = vmatprep.subr.mxu0 0.0
    %1153 = vmatpush2.msra.mxu0 0.0
    %1154 = vmatprep.mubr.f32.mxu0 0.0
    %1155 = vmatmul.mubr.f32.gmra.mxu0 %v418
    %v1156 = vpop.f32.mrf.mxu0
    %v1157 = vadd.f32 0.0, %v1156
    %v1158 = vpop.f32.mrf.mxu0
    %1159 = vmatprep.mubr.f32.mxu0 0.0
    %1160 = vmatmul.mubr.f32.gmra.mxu0 %v421
    %v1161 = vpop.f32.mrf.mxu0
    %v1162 = vadd.f32 0.0, %v1161
    %v1163 = vpop.f32.mrf.mxu0
    %1164 = vmatprep.mubr.f32.mxu0 0.0
    %1165 = vmatmul.mubr.f32.gmra.mxu0 %v424
    %v1166 = vpop.f32.mrf.mxu0
    %v1167 = vadd.f32 0.0, %v1166
    %v1168 = vpop.f32.mrf.mxu0
    %1169 = vdwg.mxu0
    %v1170 = vld [vmem:[#allocation7] sm:$0xff]
    %v1171 = vld [vmem:[#allocation7 + $0x8] sm:$0xff]
    %v1172 = vld [vmem:[#allocation7 + $0x10] sm:$0xff]
    %v1173 = vld [vmem:[#allocation7 + $0x18] sm:$0xff]
    %v1174 = vld [vmem:[#allocation7 + $0x20] sm:$0xff]
    %v1175 = vld [vmem:[#allocation7 + $0x28] sm:$0xff]
    %v1176 = vld [vmem:[#allocation7 + $0x30] sm:$0xff]
    %v1177 = vld [vmem:[#allocation7 + $0x38] sm:$0xff]
    %v1178 = vld [vmem:[#allocation7 + $0x40] sm:$0xff]
    %v1179 = vld [vmem:[#allocation7 + $0x48] sm:$0xff]
    %v1180 = vld [vmem:[#allocation7 + $0x50] sm:$0xff]
    %v1181 = vld [vmem:[#allocation7 + $0x58] sm:$0xff]
    %v1182 = vld [vmem:[#allocation7 + $0x60] sm:$0xff]
    %v1183 = vld [vmem:[#allocation7 + $0x68] sm:$0xff]
    %v1184 = vld [vmem:[#allocation7 + $0x70] sm:$0xff]
    %v1185 = vld [vmem:[#allocation7 + $0x78] sm:$0xff]
    %v1186 = vld [vmem:[#allocation7 + $0x80] sm:$0xff]
    %v1187 = vld [vmem:[#allocation7 + $0x88] sm:$0xff]
    %v1188 = vld [vmem:[#allocation7 + $0x90] sm:$0xff]
    %v1189 = vld [vmem:[#allocation7 + $0x98] sm:$0xff]
    %v1190 = vld [vmem:[#allocation7 + $0xa0] sm:$0xff]
    %v1191 = vld [vmem:[#allocation7 + $0xa8] sm:$0xff]
    %v1192 = vld [vmem:[#allocation7 + $0xb0] sm:$0xff]
    %v1193 = vld [vmem:[#allocation7 + $0xb8] sm:$0xff]
    %v1194 = vld [vmem:[#allocation7 + $0xc0] sm:$0xff]
    %v1195 = vld [vmem:[#allocation7 + $0xc8] sm:$0xff]
    %v1196 = vld [vmem:[#allocation7 + $0xd0] sm:$0xff]
    %v1197 = vld [vmem:[#allocation7 + $0xd8] sm:$0xff]
    %v1198 = vld [vmem:[#allocation7 + $0xe0] sm:$0xff]
    %v1199 = vld [vmem:[#allocation7 + $0xe8] sm:$0xff]
    %v1200 = vld [vmem:[#allocation7 + $0xf0] sm:$0xff]
    %v1201 = vld [vmem:[#allocation7 + $0xf8] sm:$0xff]
    %v1203 = vsel %vm218, %v380, 0
    %v1206 = vsel %vm218, %v381, 0
    %v1209 = vsel %vm218, %v382, 0
    %1211 = vmatprep.subr.mxu0 0.0
    %1212 = vmatpush1.msra.mxu0 0.0
    %1213 = vmatprep.subr.mxu0 0.0
    %1214 = vmatpush1.msra.mxu0 0.0
    %1215 = vmatprep.subr.mxu0 0.0
    %1216 = vmatpush1.msra.mxu0 0.0
    %1217 = vmatprep.subr.mxu0 0.0
    %1218 = vmatpush1.msra.mxu0 0.0
    %1219 = vmatprep.subr.mxu0 0.0
    %1220 = vmatpush1.msra.mxu0 0.0
    %1221 = vmatprep.subr.mxu0 0.0
    %1222 = vmatpush1.msra.mxu0 0.0
    %1223 = vmatprep.subr.mxu0 0.0
    %1224 = vmatpush1.msra.mxu0 0.0
    %1225 = vmatprep.subr.mxu0 0.0
    %1226 = vmatpush1.msra.mxu0 0.0
    %1227 = vmatprep.subr.mxu0 0.0
    %1228 = vmatpush1.msra.mxu0 0.0
    %1229 = vmatprep.subr.mxu0 0.0
    %1230 = vmatpush1.msra.mxu0 0.0
    %1231 = vmatprep.subr.mxu0 0.0
    %1232 = vmatpush1.msra.mxu0 0.0
    %1233 = vmatprep.subr.mxu0 0.0
    %1234 = vmatpush1.msra.mxu0 0.0
    %1235 = vmatprep.subr.mxu0 0.0
    %1236 = vmatpush1.msra.mxu0 0.0
    %1237 = vmatprep.subr.mxu0 0.0
    %1238 = vmatpush1.msra.mxu0 0.0
    %1239 = vmatprep.subr.mxu0 %v1187
    %1240 = vmatpush1.msra.mxu0 %v1186
    %1241 = vmatprep.subr.mxu0 %v1171
    %1242 = vmatpush1.msra.mxu0 %v1170
    %1243 = vmatprep.subr.mxu0 0.0
    %1244 = vmatpush2.msra.mxu0 0.0
    %1245 = vmatprep.subr.mxu0 0.0
    %1246 = vmatpush2.msra.mxu0 0.0
    %1247 = vmatprep.subr.mxu0 0.0
    %1248 = vmatpush2.msra.mxu0 0.0
    %1249 = vmatprep.subr.mxu0 0.0
    %1250 = vmatpush2.msra.mxu0 0.0
    %1251 = vmatprep.subr.mxu0 0.0
    %1252 = vmatpush2.msra.mxu0 0.0
    %1253 = vmatprep.subr.mxu0 0.0
    %1254 = vmatpush2.msra.mxu0 0.0
    %1255 = vmatprep.subr.mxu0 0.0
    %1256 = vmatpush2.msra.mxu0 0.0
    %1257 = vmatprep.subr.mxu0 0.0
    %1258 = vmatpush2.msra.mxu0 0.0
    %1259 = vmatprep.subr.mxu0 0.0
    %1260 = vmatpush2.msra.mxu0 0.0
    %1261 = vmatprep.subr.mxu0 0.0
    %1262 = vmatpush2.msra.mxu0 0.0
    %1263 = vmatprep.subr.mxu0 0.0
    %1264 = vmatpush2.msra.mxu0 0.0
    %1265 = vmatprep.subr.mxu0 0.0
    %1266 = vmatpush2.msra.mxu0 0.0
    %1267 = vmatprep.subr.mxu0 0.0
    %1268 = vmatpush2.msra.mxu0 0.0
    %1269 = vmatprep.subr.mxu0 0.0
    %1270 = vmatpush2.msra.mxu0 0.0
    %1271 = vmatprep.subr.mxu0 0.0
    %1272 = vmatpush2.msra.mxu0 0.0
    %1273 = vmatprep.subr.mxu0 0.0
    %1274 = vmatpush2.msra.mxu0 0.0
    %1275 = vmatprep.mubr.f32.mxu0 0.0
    %1276 = vmatmul.mubr.f32.gmra.mxu0 %v1203
    %v1277 = vpop.f32.mrf.mxu0
    %v1278 = vadd.f32 0.0, %v1277
    %v1279 = vpop.f32.mrf.mxu0
    %v1280 = vadd.f32 0.0, %v1279
    %1281 = vmatprep.mubr.f32.mxu0 0.0
    %1282 = vmatmul.mubr.f32.gmra.mxu0 %v1206
    %v1283 = vpop.f32.mrf.mxu0
    %v1284 = vadd.f32 0.0, %v1283
    %v1285 = vpop.f32.mrf.mxu0
    %v1286 = vadd.f32 0.0, %v1285
    %1287 = vmatprep.mubr.f32.mxu0 0.0
    %1288 = vmatmul.mubr.f32.gmra.mxu0 %v1209
    %v1289 = vpop.f32.mrf.mxu0
    %v1290 = vadd.f32 0.0, %v1289
    %v1291 = vpop.f32.mrf.mxu0
    %v1292 = vadd.f32 0.0, %v1291
    %1293 = vdwg.mxu0
    %1294 = vmatprep.subr.mxu0 0.0
    %1295 = vmatpush1.msra.mxu0 0.0
    %1296 = vmatprep.subr.mxu0 0.0
    %1297 = vmatpush1.msra.mxu0 0.0
    %1298 = vmatprep.subr.mxu0 0.0
    %1299 = vmatpush1.msra.mxu0 0.0
    %1300 = vmatprep.subr.mxu0 0.0
    %1301 = vmatpush1.msra.mxu0 0.0
    %1302 = vmatprep.subr.mxu0 0.0
    %1303 = vmatpush1.msra.mxu0 0.0
    %1304 = vmatprep.subr.mxu0 0.0
    %1305 = vmatpush1.msra.mxu0 0.0
    %1306 = vmatprep.subr.mxu0 0.0
    %1307 = vmatpush1.msra.mxu0 0.0
    %1308 = vmatprep.subr.mxu0 0.0
    %1309 = vmatpush1.msra.mxu0 0.0
    %1310 = vmatprep.subr.mxu0 0.0
    %1311 = vmatpush1.msra.mxu0 0.0
    %1312 = vmatprep.subr.mxu0 0.0
    %1313 = vmatpush1.msra.mxu0 0.0
    %1314 = vmatprep.subr.mxu0 0.0
    %1315 = vmatpush1.msra.mxu0 0.0
    %1316 = vmatprep.subr.mxu0 0.0
    %1317 = vmatpush1.msra.mxu0 0.0
    %1318 = vmatprep.subr.mxu0 0.0
    %1319 = vmatpush1.msra.mxu0 0.0
    %1320 = vmatprep.subr.mxu0 0.0
    %1321 = vmatpush1.msra.mxu0 0.0
    %1322 = vmatprep.subr.mxu0 %v1189
    %1323 = vmatpush1.msra.mxu0 %v1188
    %1324 = vmatprep.subr.mxu0 %v1173
    %1325 = vmatpush1.msra.mxu0 %v1172
    %1326 = vmatprep.subr.mxu0 0.0
    %1327 = vmatpush2.msra.mxu0 0.0
    %1328 = vmatprep.subr.mxu0 0.0
    %1329 = vmatpush2.msra.mxu0 0.0
    %1330 = vmatprep.subr.mxu0 0.0
    %1331 = vmatpush2.msra.mxu0 0.0
    %1332 = vmatprep.subr.mxu0 0.0
    %1333 = vmatpush2.msra.mxu0 0.0
    %1334 = vmatprep.subr.mxu0 0.0
    %1335 = vmatpush2.msra.mxu0 0.0
    %1336 = vmatprep.subr.mxu0 0.0
    %1337 = vmatpush2.msra.mxu0 0.0
    %1338 = vmatprep.subr.mxu0 0.0
    %1339 = vmatpush2.msra.mxu0 0.0
    %1340 = vmatprep.subr.mxu0 0.0
    %1341 = vmatpush2.msra.mxu0 0.0
    %1342 = vmatprep.subr.mxu0 0.0
    %1343 = vmatpush2.msra.mxu0 0.0
    %1344 = vmatprep.subr.mxu0 0.0
    %1345 = vmatpush2.msra.mxu0 0.0
    %1346 = vmatprep.subr.mxu0 0.0
    %1347 = vmatpush2.msra.mxu0 0.0
    %1348 = vmatprep.subr.mxu0 0.0
    %1349 = vmatpush2.msra.mxu0 0.0
    %1350 = vmatprep.subr.mxu0 0.0
    %1351 = vmatpush2.msra.mxu0 0.0
    %1352 = vmatprep.subr.mxu0 0.0
    %1353 = vmatpush2.msra.mxu0 0.0
    %1354 = vmatprep.subr.mxu0 0.0
    %1355 = vmatpush2.msra.mxu0 0.0
    %1356 = vmatprep.subr.mxu0 0.0
    %1357 = vmatpush2.msra.mxu0 0.0
    %1358 = vmatprep.mubr.f32.mxu0 0.0
    %1359 = vmatmul.mubr.f32.gmra.mxu0 %v1203
    %v1360 = vpop.f32.mrf.mxu0
    %v1361 = vadd.f32 0.0, %v1360
    %v1362 = vpop.f32.mrf.mxu0
    %v1363 = vadd.f32 0.0, %v1362
    %1364 = vmatprep.mubr.f32.mxu0 0.0
    %1365 = vmatmul.mubr.f32.gmra.mxu0 %v1206
    %v1366 = vpop.f32.mrf.mxu0
    %v1367 = vadd.f32 0.0, %v1366
    %v1368 = vpop.f32.mrf.mxu0
    %v1369 = vadd.f32 0.0, %v1368
    %1370 = vmatprep.mubr.f32.mxu0 0.0
    %1371 = vmatmul.mubr.f32.gmra.mxu0 %v1209
    %v1372 = vpop.f32.mrf.mxu0
    %v1373 = vadd.f32 0.0, %v1372
    %v1374 = vpop.f32.mrf.mxu0
    %v1375 = vadd.f32 0.0, %v1374
    %1376 = vdwg.mxu0
    %1377 = vmatprep.subr.mxu0 0.0
    %1378 = vmatpush1.msra.mxu0 0.0
    %1379 = vmatprep.subr.mxu0 0.0
    %1380 = vmatpush1.msra.mxu0 0.0
    %1381 = vmatprep.subr.mxu0 0.0
    %1382 = vmatpush1.msra.mxu0 0.0
    %1383 = vmatprep.subr.mxu0 0.0
    %1384 = vmatpush1.msra.mxu0 0.0
    %1385 = vmatprep.subr.mxu0 0.0
    %1386 = vmatpush1.msra.mxu0 0.0
    %1387 = vmatprep.subr.mxu0 0.0
    %1388 = vmatpush1.msra.mxu0 0.0
    %1389 = vmatprep.subr.mxu0 0.0
    %1390 = vmatpush1.msra.mxu0 0.0
    %1391 = vmatprep.subr.mxu0 0.0
    %1392 = vmatpush1.msra.mxu0 0.0
    %1393 = vmatprep.subr.mxu0 0.0
    %1394 = vmatpush1.msra.mxu0 0.0
    %1395 = vmatprep.subr.mxu0 0.0
    %1396 = vmatpush1.msra.mxu0 0.0
    %1397 = vmatprep.subr.mxu0 0.0
    %1398 = vmatpush1.msra.mxu0 0.0
    %1399 = vmatprep.subr.mxu0 0.0
    %1400 = vmatpush1.msra.mxu0 0.0
    %1401 = vmatprep.subr.mxu0 0.0
    %1402 = vmatpush1.msra.mxu0 0.0
    %1403 = vmatprep.subr.mxu0 0.0
    %1404 = vmatpush1.msra.mxu0 0.0
    %1405 = vmatprep.subr.mxu0 %v1191
    %1406 = vmatpush1.msra.mxu0 %v1190
    %1407 = vmatprep.subr.mxu0 %v1175
    %1408 = vmatpush1.msra.mxu0 %v1174
    %1409 = vmatprep.subr.mxu0 0.0
    %1410 = vmatpush2.msra.mxu0 0.0
    %1411 = vmatprep.subr.mxu0 0.0
    %1412 = vmatpush2.msra.mxu0 0.0
    %1413 = vmatprep.subr.mxu0 0.0
    %1414 = vmatpush2.msra.mxu0 0.0
    %1415 = vmatprep.subr.mxu0 0.0
    %1416 = vmatpush2.msra.mxu0 0.0
    %1417 = vmatprep.subr.mxu0 0.0
    %1418 = vmatpush2.msra.mxu0 0.0
    %1419 = vmatprep.subr.mxu0 0.0
    %1420 = vmatpush2.msra.mxu0 0.0
    %1421 = vmatprep.subr.mxu0 0.0
    %1422 = vmatpush2.msra.mxu0 0.0
    %1423 = vmatprep.subr.mxu0 0.0
    %1424 = vmatpush2.msra.mxu0 0.0
    %1425 = vmatprep.subr.mxu0 0.0
    %1426 = vmatpush2.msra.mxu0 0.0
    %1427 = vmatprep.subr.mxu0 0.0
    %1428 = vmatpush2.msra.mxu0 0.0
    %1429 = vmatprep.subr.mxu0 0.0
    %1430 = vmatpush2.msra.mxu0 0.0
    %1431 = vmatprep.subr.mxu0 0.0
    %1432 = vmatpush2.msra.mxu0 0.0
    %1433 = vmatprep.subr.mxu0 0.0
    %1434 = vmatpush2.msra.mxu0 0.0
    %1435 = vmatprep.subr.mxu0 0.0
    %1436 = vmatpush2.msra.mxu0 0.0
    %1437 = vmatprep.subr.mxu0 0.0
    %1438 = vmatpush2.msra.mxu0 0.0
    %1439 = vmatprep.subr.mxu0 0.0
    %1440 = vmatpush2.msra.mxu0 0.0
    %1441 = vmatprep.mubr.f32.mxu0 0.0
    %1442 = vmatmul.mubr.f32.gmra.mxu0 %v1203
    %v1443 = vpop.f32.mrf.mxu0
    %v1444 = vadd.f32 0.0, %v1443
    %v1445 = vpop.f32.mrf.mxu0
    %v1446 = vadd.f32 0.0, %v1445
    %1447 = vmatprep.mubr.f32.mxu0 0.0
    %1448 = vmatmul.mubr.f32.gmra.mxu0 %v1206
    %v1449 = vpop.f32.mrf.mxu0
    %v1450 = vadd.f32 0.0, %v1449
    %v1451 = vpop.f32.mrf.mxu0
    %v1452 = vadd.f32 0.0, %v1451
    %1453 = vmatprep.mubr.f32.mxu0 0.0
    %1454 = vmatmul.mubr.f32.gmra.mxu0 %v1209
    %v1455 = vpop.f32.mrf.mxu0
    %v1456 = vadd.f32 0.0, %v1455
    %v1457 = vpop.f32.mrf.mxu0
    %v1458 = vadd.f32 0.0, %v1457
    %1459 = vdwg.mxu0
    %1460 = vmatprep.subr.mxu0 0.0
    %1461 = vmatpush1.msra.mxu0 0.0
    %1462 = vmatprep.subr.mxu0 0.0
    %1463 = vmatpush1.msra.mxu0 0.0
    %1464 = vmatprep.subr.mxu0 0.0
    %1465 = vmatpush1.msra.mxu0 0.0
    %1466 = vmatprep.subr.mxu0 0.0
    %1467 = vmatpush1.msra.mxu0 0.0
    %1468 = vmatprep.subr.mxu0 0.0
    %1469 = vmatpush1.msra.mxu0 0.0
    %1470 = vmatprep.subr.mxu0 0.0
    %1471 = vmatpush1.msra.mxu0 0.0
    %1472 = vmatprep.subr.mxu0 0.0
    %1473 = vmatpush1.msra.mxu0 0.0
    %1474 = vmatprep.subr.mxu0 0.0
    %1475 = vmatpush1.msra.mxu0 0.0
    %1476 = vmatprep.subr.mxu0 0.0
    %1477 = vmatpush1.msra.mxu0 0.0
    %1478 = vmatprep.subr.mxu0 0.0
    %1479 = vmatpush1.msra.mxu0 0.0
    %1480 = vmatprep.subr.mxu0 0.0
    %1481 = vmatpush1.msra.mxu0 0.0
    %1482 = vmatprep.subr.mxu0 0.0
    %1483 = vmatpush1.msra.mxu0 0.0
    %1484 = vmatprep.subr.mxu0 0.0
    %1485 = vmatpush1.msra.mxu0 0.0
    %1486 = vmatprep.subr.mxu0 0.0
    %1487 = vmatpush1.msra.mxu0 0.0
    %1488 = vmatprep.subr.mxu0 %v1193
    %1489 = vmatpush1.msra.mxu0 %v1192
    %1490 = vmatprep.subr.mxu0 %v1177
    %1491 = vmatpush1.msra.mxu0 %v1176
    %1492 = vmatprep.subr.mxu0 0.0
    %1493 = vmatpush2.msra.mxu0 0.0
    %1494 = vmatprep.subr.mxu0 0.0
    %1495 = vmatpush2.msra.mxu0 0.0
    %1496 = vmatprep.subr.mxu0 0.0
    %1497 = vmatpush2.msra.mxu0 0.0
    %1498 = vmatprep.subr.mxu0 0.0
    %1499 = vmatpush2.msra.mxu0 0.0
    %1500 = vmatprep.subr.mxu0 0.0
    %1501 = vmatpush2.msra.mxu0 0.0
    %1502 = vmatprep.subr.mxu0 0.0
    %1503 = vmatpush2.msra.mxu0 0.0
    %1504 = vmatprep.subr.mxu0 0.0
    %1505 = vmatpush2.msra.mxu0 0.0
    %1506 = vmatprep.subr.mxu0 0.0
    %1507 = vmatpush2.msra.mxu0 0.0
    %1508 = vmatprep.subr.mxu0 0.0
    %1509 = vmatpush2.msra.mxu0 0.0
    %1510 = vmatprep.subr.mxu0 0.0
    %1511 = vmatpush2.msra.mxu0 0.0
    %1512 = vmatprep.subr.mxu0 0.0
    %1513 = vmatpush2.msra.mxu0 0.0
    %1514 = vmatprep.subr.mxu0 0.0
    %1515 = vmatpush2.msra.mxu0 0.0
    %1516 = vmatprep.subr.mxu0 0.0
    %1517 = vmatpush2.msra.mxu0 0.0
    %1518 = vmatprep.subr.mxu0 0.0
    %1519 = vmatpush2.msra.mxu0 0.0
    %1520 = vmatprep.subr.mxu0 0.0
    %1521 = vmatpush2.msra.mxu0 0.0
    %1522 = vmatprep.subr.mxu0 0.0
    %1523 = vmatpush2.msra.mxu0 0.0
    %1524 = vmatprep.mubr.f32.mxu0 0.0
    %1525 = vmatmul.mubr.f32.gmra.mxu0 %v1203
    %v1526 = vpop.f32.mrf.mxu0
    %v1527 = vadd.f32 0.0, %v1526
    %v1528 = vpop.f32.mrf.mxu0
    %v1529 = vadd.f32 0.0, %v1528
    %1530 = vmatprep.mubr.f32.mxu0 0.0
    %1531 = vmatmul.mubr.f32.gmra.mxu0 %v1206
    %v1532 = vpop.f32.mrf.mxu0
    %v1533 = vadd.f32 0.0, %v1532
    %v1534 = vpop.f32.mrf.mxu0
    %v1535 = vadd.f32 0.0, %v1534
    %1536 = vmatprep.mubr.f32.mxu0 0.0
    %1537 = vmatmul.mubr.f32.gmra.mxu0 %v1209
    %v1538 = vpop.f32.mrf.mxu0
    %v1539 = vadd.f32 0.0, %v1538
    %v1540 = vpop.f32.mrf.mxu0
    %v1541 = vadd.f32 0.0, %v1540
    %1542 = vdwg.mxu0
    %1543 = vmatprep.subr.mxu0 0.0
    %1544 = vmatpush1.msra.mxu0 0.0
    %1545 = vmatprep.subr.mxu0 0.0
    %1546 = vmatpush1.msra.mxu0 0.0
    %1547 = vmatprep.subr.mxu0 0.0
    %1548 = vmatpush1.msra.mxu0 0.0
    %1549 = vmatprep.subr.mxu0 0.0
    %1550 = vmatpush1.msra.mxu0 0.0
    %1551 = vmatprep.subr.mxu0 0.0
    %1552 = vmatpush1.msra.mxu0 0.0
    %1553 = vmatprep.subr.mxu0 0.0
    %1554 = vmatpush1.msra.mxu0 0.0
    %1555 = vmatprep.subr.mxu0 0.0
    %1556 = vmatpush1.msra.mxu0 0.0
    %1557 = vmatprep.subr.mxu0 0.0
    %1558 = vmatpush1.msra.mxu0 0.0
    %1559 = vmatprep.subr.mxu0 0.0
    %1560 = vmatpush1.msra.mxu0 0.0
    %1561 = vmatprep.subr.mxu0 0.0
    %1562 = vmatpush1.msra.mxu0 0.0
    %1563 = vmatprep.subr.mxu0 0.0
    %1564 = vmatpush1.msra.mxu0 0.0
    %1565 = vmatprep.subr.mxu0 0.0
    %1566 = vmatpush1.msra.mxu0 0.0
    %1567 = vmatprep.subr.mxu0 0.0
    %1568 = vmatpush1.msra.mxu0 0.0
    %1569 = vmatprep.subr.mxu0 0.0
    %1570 = vmatpush1.msra.mxu0 0.0
    %1571 = vmatprep.subr.mxu0 %v1195
    %1572 = vmatpush1.msra.mxu0 %v1194
    %1573 = vmatprep.subr.mxu0 %v1179
    %1574 = vmatpush1.msra.mxu0 %v1178
    %1575 = vmatprep.subr.mxu0 0.0
    %1576 = vmatpush2.msra.mxu0 0.0
    %1577 = vmatprep.subr.mxu0 0.0
    %1578 = vmatpush2.msra.mxu0 0.0
    %1579 = vmatprep.subr.mxu0 0.0
    %1580 = vmatpush2.msra.mxu0 0.0
    %1581 = vmatprep.subr.mxu0 0.0
    %1582 = vmatpush2.msra.mxu0 0.0
    %1583 = vmatprep.subr.mxu0 0.0
    %1584 = vmatpush2.msra.mxu0 0.0
    %1585 = vmatprep.subr.mxu0 0.0
    %1586 = vmatpush2.msra.mxu0 0.0
    %1587 = vmatprep.subr.mxu0 0.0
    %1588 = vmatpush2.msra.mxu0 0.0
    %1589 = vmatprep.subr.mxu0 0.0
    %1590 = vmatpush2.msra.mxu0 0.0
    %1591 = vmatprep.subr.mxu0 0.0
    %1592 = vmatpush2.msra.mxu0 0.0
    %1593 = vmatprep.subr.mxu0 0.0
    %1594 = vmatpush2.msra.mxu0 0.0
    %1595 = vmatprep.subr.mxu0 0.0
    %1596 = vmatpush2.msra.mxu0 0.0
    %1597 = vmatprep.subr.mxu0 0.0
    %1598 = vmatpush2.msra.mxu0 0.0
    %1599 = vmatprep.subr.mxu0 0.0
    %1600 = vmatpush2.msra.mxu0 0.0
    %1601 = vmatprep.subr.mxu0 0.0
    %1602 = vmatpush2.msra.mxu0 0.0
    %1603 = vmatprep.subr.mxu0 0.0
    %1604 = vmatpush2.msra.mxu0 0.0
    %1605 = vmatprep.subr.mxu0 0.0
    %1606 = vmatpush2.msra.mxu0 0.0
    %1607 = vmatprep.mubr.f32.mxu0 0.0
    %1608 = vmatmul.mubr.f32.gmra.mxu0 %v1203
    %v1609 = vpop.f32.mrf.mxu0
    %v1610 = vadd.f32 0.0, %v1609
    %v1611 = vpop.f32.mrf.mxu0
    %v1612 = vadd.f32 0.0, %v1611
    %1613 = vmatprep.mubr.f32.mxu0 0.0
    %1614 = vmatmul.mubr.f32.gmra.mxu0 %v1206
    %v1615 = vpop.f32.mrf.mxu0
    %v1616 = vadd.f32 0.0, %v1615
    %v1617 = vpop.f32.mrf.mxu0
    %v1618 = vadd.f32 0.0, %v1617
    %1619 = vmatprep.mubr.f32.mxu0 0.0
    %1620 = vmatmul.mubr.f32.gmra.mxu0 %v1209
    %v1621 = vpop.f32.mrf.mxu0
    %v1622 = vadd.f32 0.0, %v1621
    %v1623 = vpop.f32.mrf.mxu0
    %v1624 = vadd.f32 0.0, %v1623
    %1625 = vdwg.mxu0
    %1626 = vmatprep.subr.mxu0 0.0
    %1627 = vmatpush1.msra.mxu0 0.0
    %1628 = vmatprep.subr.mxu0 0.0
    %1629 = vmatpush1.msra.mxu0 0.0
    %1630 = vmatprep.subr.mxu0 0.0
    %1631 = vmatpush1.msra.mxu0 0.0
    %1632 = vmatprep.subr.mxu0 0.0
    %1633 = vmatpush1.msra.mxu0 0.0
    %1634 = vmatprep.subr.mxu0 0.0
    %1635 = vmatpush1.msra.mxu0 0.0
    %1636 = vmatprep.subr.mxu0 0.0
    %1637 = vmatpush1.msra.mxu0 0.0
    %1638 = vmatprep.subr.mxu0 0.0
    %1639 = vmatpush1.msra.mxu0 0.0
    %1640 = vmatprep.subr.mxu0 0.0
    %1641 = vmatpush1.msra.mxu0 0.0
    %1642 = vmatprep.subr.mxu0 0.0
    %1643 = vmatpush1.msra.mxu0 0.0
    %1644 = vmatprep.subr.mxu0 0.0
    %1645 = vmatpush1.msra.mxu0 0.0
    %1646 = vmatprep.subr.mxu0 0.0
    %1647 = vmatpush1.msra.mxu0 0.0
    %1648 = vmatprep.subr.mxu0 0.0
    %1649 = vmatpush1.msra.mxu0 0.0
    %1650 = vmatprep.subr.mxu0 0.0
    %1651 = vmatpush1.msra.mxu0 0.0
    %1652 = vmatprep.subr.mxu0 0.0
    %1653 = vmatpush1.msra.mxu0 0.0
    %1654 = vmatprep.subr.mxu0 %v1197
    %1655 = vmatpush1.msra.mxu0 %v1196
    %1656 = vmatprep.subr.mxu0 %v1181
    %1657 = vmatpush1.msra.mxu0 %v1180
    %1658 = vmatprep.subr.mxu0 0.0
    %1659 = vmatpush2.msra.mxu0 0.0
    %1660 = vmatprep.subr.mxu0 0.0
    %1661 = vmatpush2.msra.mxu0 0.0
    %1662 = vmatprep.subr.mxu0 0.0
    %1663 = vmatpush2.msra.mxu0 0.0
    %1664 = vmatprep.subr.mxu0 0.0
    %1665 = vmatpush2.msra.mxu0 0.0
    %1666 = vmatprep.subr.mxu0 0.0
    %1667 = vmatpush2.msra.mxu0 0.0
    %1668 = vmatprep.subr.mxu0 0.0
    %1669 = vmatpush2.msra.mxu0 0.0
    %1670 = vmatprep.subr.mxu0 0.0
    %1671 = vmatpush2.msra.mxu0 0.0
    %1672 = vmatprep.subr.mxu0 0.0
    %1673 = vmatpush2.msra.mxu0 0.0
    %1674 = vmatprep.subr.mxu0 0.0
    %1675 = vmatpush2.msra.mxu0 0.0
    %1676 = vmatprep.subr.mxu0 0.0
    %1677 = vmatpush2.msra.mxu0 0.0
    %1678 = vmatprep.subr.mxu0 0.0
    %1679 = vmatpush2.msra.mxu0 0.0
    %1680 = vmatprep.subr.mxu0 0.0
    %1681 = vmatpush2.msra.mxu0 0.0
    %1682 = vmatprep.subr.mxu0 0.0
    %1683 = vmatpush2.msra.mxu0 0.0
    %1684 = vmatprep.subr.mxu0 0.0
    %1685 = vmatpush2.msra.mxu0 0.0
    %1686 = vmatprep.subr.mxu0 0.0
    %1687 = vmatpush2.msra.mxu0 0.0
    %1688 = vmatprep.subr.mxu0 0.0
    %1689 = vmatpush2.msra.mxu0 0.0
    %1690 = vmatprep.mubr.f32.mxu0 0.0
    %1691 = vmatmul.mubr.f32.gmra.mxu0 %v1203
    %v1692 = vpop.f32.mrf.mxu0
    %v1693 = vadd.f32 0.0, %v1692
    %v1694 = vpop.f32.mrf.mxu0
    %v1695 = vadd.f32 0.0, %v1694
    %1696 = vmatprep.mubr.f32.mxu0 0.0
    %1697 = vmatmul.mubr.f32.gmra.mxu0 %v1206
    %v1698 = vpop.f32.mrf.mxu0
    %v1699 = vadd.f32 0.0, %v1698
    %v1700 = vpop.f32.mrf.mxu0
    %v1701 = vadd.f32 0.0, %v1700
    %1702 = vmatprep.mubr.f32.mxu0 0.0
    %1703 = vmatmul.mubr.f32.gmra.mxu0 %v1209
    %v1704 = vpop.f32.mrf.mxu0
    %v1705 = vadd.f32 0.0, %v1704
    %v1706 = vpop.f32.mrf.mxu0
    %v1707 = vadd.f32 0.0, %v1706
    %1708 = vdwg.mxu0
    %1709 = vmatprep.subr.mxu0 0.0
    %1710 = vmatpush1.msra.mxu0 0.0
    %1711 = vmatprep.subr.mxu0 0.0
    %1712 = vmatpush1.msra.mxu0 0.0
    %1713 = vmatprep.subr.mxu0 0.0
    %1714 = vmatpush1.msra.mxu0 0.0
    %1715 = vmatprep.subr.mxu0 0.0
    %1716 = vmatpush1.msra.mxu0 0.0
    %1717 = vmatprep.subr.mxu0 0.0
    %1718 = vmatpush1.msra.mxu0 0.0
    %1719 = vmatprep.subr.mxu0 0.0
    %1720 = vmatpush1.msra.mxu0 0.0
    %1721 = vmatprep.subr.mxu0 0.0
    %1722 = vmatpush1.msra.mxu0 0.0
    %1723 = vmatprep.subr.mxu0 0.0
    %1724 = vmatpush1.msra.mxu0 0.0
    %1725 = vmatprep.subr.mxu0 0.0
    %1726 = vmatpush1.msra.mxu0 0.0
    %1727 = vmatprep.subr.mxu0 0.0
    %1728 = vmatpush1.msra.mxu0 0.0
    %1729 = vmatprep.subr.mxu0 0.0
    %1730 = vmatpush1.msra.mxu0 0.0
    %1731 = vmatprep.subr.mxu0 0.0
    %1732 = vmatpush1.msra.mxu0 0.0
    %1733 = vmatprep.subr.mxu0 0.0
    %1734 = vmatpush1.msra.mxu0 0.0
    %1735 = vmatprep.subr.mxu0 0.0
    %1736 = vmatpush1.msra.mxu0 0.0
    %1737 = vmatprep.subr.mxu0 %v1199
    %1738 = vmatpush1.msra.mxu0 %v1198
    %1739 = vmatprep.subr.mxu0 %v1183
    %1740 = vmatpush1.msra.mxu0 %v1182
    %1741 = vmatprep.subr.mxu0 0.0
    %1742 = vmatpush2.msra.mxu0 0.0
    %1743 = vmatprep.subr.mxu0 0.0
    %1744 = vmatpush2.msra.mxu0 0.0
    %1745 = vmatprep.subr.mxu0 0.0
    %1746 = vmatpush2.msra.mxu0 0.0
    %1747 = vmatprep.subr.mxu0 0.0
    %1748 = vmatpush2.msra.mxu0 0.0
    %1749 = vmatprep.subr.mxu0 0.0
    %1750 = vmatpush2.msra.mxu0 0.0
    %1751 = vmatprep.subr.mxu0 0.0
    %1752 = vmatpush2.msra.mxu0 0.0
    %1753 = vmatprep.subr.mxu0 0.0
    %1754 = vmatpush2.msra.mxu0 0.0
    %1755 = vmatprep.subr.mxu0 0.0
    %1756 = vmatpush2.msra.mxu0 0.0
    %1757 = vmatprep.subr.mxu0 0.0
    %1758 = vmatpush2.msra.mxu0 0.0
    %1759 = vmatprep.subr.mxu0 0.0
    %1760 = vmatpush2.msra.mxu0 0.0
    %1761 = vmatprep.subr.mxu0 0.0
    %1762 = vmatpush2.msra.mxu0 0.0
    %1763 = vmatprep.subr.mxu0 0.0
    %1764 = vmatpush2.msra.mxu0 0.0
    %1765 = vmatprep.subr.mxu0 0.0
    %1766 = vmatpush2.msra.mxu0 0.0
    %1767 = vmatprep.subr.mxu0 0.0
    %1768 = vmatpush2.msra.mxu0 0.0
    %1769 = vmatprep.subr.mxu0 0.0
    %1770 = vmatpush2.msra.mxu0 0.0
    %1771 = vmatprep.subr.mxu0 0.0
    %1772 = vmatpush2.msra.mxu0 0.0
    %1773 = vmatprep.mubr.f32.mxu0 0.0
    %1774 = vmatmul.mubr.f32.gmra.mxu0 %v1203
    %v1775 = vpop.f32.mrf.mxu0
    %v1776 = vadd.f32 0.0, %v1775
    %v1777 = vpop.f32.mrf.mxu0
    %v1778 = vadd.f32 0.0, %v1777
    %1779 = vmatprep.mubr.f32.mxu0 0.0
    %1780 = vmatmul.mubr.f32.gmra.mxu0 %v1206
    %v1781 = vpop.f32.mrf.mxu0
    %v1782 = vadd.f32 0.0, %v1781
    %v1783 = vpop.f32.mrf.mxu0
    %v1784 = vadd.f32 0.0, %v1783
    %1785 = vmatprep.mubr.f32.mxu0 0.0
    %1786 = vmatmul.mubr.f32.gmra.mxu0 %v1209
    %v1787 = vpop.f32.mrf.mxu0
    %v1788 = vadd.f32 0.0, %v1787
    %v1789 = vpop.f32.mrf.mxu0
    %v1790 = vadd.f32 0.0, %v1789
    %1791 = vdwg.mxu0
    %1792 = vmatprep.subr.mxu0 0.0
    %1793 = vmatpush1.msra.mxu0 0.0
    %1794 = vmatprep.subr.mxu0 0.0
    %1795 = vmatpush1.msra.mxu0 0.0
    %1796 = vmatprep.subr.mxu0 0.0
    %1797 = vmatpush1.msra.mxu0 0.0
    %1798 = vmatprep.subr.mxu0 0.0
    %1799 = vmatpush1.msra.mxu0 0.0
    %1800 = vmatprep.subr.mxu0 0.0
    %1801 = vmatpush1.msra.mxu0 0.0
    %1802 = vmatprep.subr.mxu0 0.0
    %1803 = vmatpush1.msra.mxu0 0.0
    %1804 = vmatprep.subr.mxu0 0.0
    %1805 = vmatpush1.msra.mxu0 0.0
    %1806 = vmatprep.subr.mxu0 0.0
    %1807 = vmatpush1.msra.mxu0 0.0
    %1808 = vmatprep.subr.mxu0 0.0
    %1809 = vmatpush1.msra.mxu0 0.0
    %1810 = vmatprep.subr.mxu0 0.0
    %1811 = vmatpush1.msra.mxu0 0.0
    %1812 = vmatprep.subr.mxu0 0.0
    %1813 = vmatpush1.msra.mxu0 0.0
    %1814 = vmatprep.subr.mxu0 0.0
    %1815 = vmatpush1.msra.mxu0 0.0
    %1816 = vmatprep.subr.mxu0 0.0
    %1817 = vmatpush1.msra.mxu0 0.0
    %1818 = vmatprep.subr.mxu0 0.0
    %1819 = vmatpush1.msra.mxu0 0.0
    %1820 = vmatprep.subr.mxu0 %v1201
    %1821 = vmatpush1.msra.mxu0 %v1200
    %1822 = vmatprep.subr.mxu0 %v1185
    %1823 = vmatpush1.msra.mxu0 %v1184
    %1824 = vmatprep.subr.mxu0 0.0
    %1825 = vmatpush2.msra.mxu0 0.0
    %1826 = vmatprep.subr.mxu0 0.0
    %1827 = vmatpush2.msra.mxu0 0.0
    %1828 = vmatprep.subr.mxu0 0.0
    %1829 = vmatpush2.msra.mxu0 0.0
    %1830 = vmatprep.subr.mxu0 0.0
    %1831 = vmatpush2.msra.mxu0 0.0
    %1832 = vmatprep.subr.mxu0 0.0
    %1833 = vmatpush2.msra.mxu0 0.0
    %1834 = vmatprep.subr.mxu0 0.0
    %1835 = vmatpush2.msra.mxu0 0.0
    %1836 = vmatprep.subr.mxu0 0.0
    %1837 = vmatpush2.msra.mxu0 0.0
    %1838 = vmatprep.subr.mxu0 0.0
    %1839 = vmatpush2.msra.mxu0 0.0
    %1840 = vmatprep.subr.mxu0 0.0
    %1841 = vmatpush2.msra.mxu0 0.0
    %1842 = vmatprep.subr.mxu0 0.0
    %1843 = vmatpush2.msra.mxu0 0.0
    %1844 = vmatprep.subr.mxu0 0.0
    %1845 = vmatpush2.msra.mxu0 0.0
    %1846 = vmatprep.subr.mxu0 0.0
    %1847 = vmatpush2.msra.mxu0 0.0
    %1848 = vmatprep.subr.mxu0 0.0
    %1849 = vmatpush2.msra.mxu0 0.0
    %1850 = vmatprep.subr.mxu0 0.0
    %1851 = vmatpush2.msra.mxu0 0.0
    %1852 = vmatprep.subr.mxu0 0.0
    %1853 = vmatpush2.msra.mxu0 0.0
    %1854 = vmatprep.subr.mxu0 0.0
    %1855 = vmatpush2.msra.mxu0 0.0
    %1856 = vmatprep.mubr.f32.mxu0 0.0
    %1857 = vmatmul.mubr.f32.gmra.mxu0 %v1203
    %v1858 = vpop.f32.mrf.mxu0
    %v1859 = vadd.f32 0.0, %v1858
    %v1860 = vpop.f32.mrf.mxu0
    %v1861 = vadd.f32 0.0, %v1860
    %1862 = vmatprep.mubr.f32.mxu0 0.0
    %1863 = vmatmul.mubr.f32.gmra.mxu0 %v1206
    %v1864 = vpop.f32.mrf.mxu0
    %v1865 = vadd.f32 0.0, %v1864
    %v1866 = vpop.f32.mrf.mxu0
    %v1867 = vadd.f32 0.0, %v1866
    %1868 = vmatprep.mubr.f32.mxu0 0.0
    %1869 = vmatmul.mubr.f32.gmra.mxu0 %v1209
    %v1870 = vpop.f32.mrf.mxu0
    %v1871 = vadd.f32 0.0, %v1870
    %v1872 = vpop.f32.mrf.mxu0
    %v1873 = vadd.f32 0.0, %v1872
    %1874 = vdwg.mxu0
    %v1875 = vld [vmem:[%s8] sm:$0x1]
    %v1877 = vlaneseq
    %v1878 = vshrl.u32 %v1877, 7
    %v1879 = vsub.s32 0, %v1878
    %v1880 = vrot.slane %v1875, %v1879
    %v1882 = vadd.f32 %v1157, %v1880
    %v1883 = vadd.f32 %v1162, %v1880
    %v1884 = vadd.f32 %v1167, %v1880
    %1885 = vset.pattern.permute.xlu0 0
    %1886 = vperm.xlu0 %1885, %v377
    %v1887 = vpop.permute.xlu0 %1886
    %1889 = vset.pattern.permute.xlu0 0
    %1890 = vperm.xlu0 %1889, %v378
    %v1891 = vpop.permute.xlu0 %1890
    %1893 = vset.pattern.permute.xlu0 0
    %1894 = vperm.xlu0 %1893, %v379
    %v1895 = vpop.permute.xlu0 %1894
    %v1897 = vmul.f32 %v1887, %v493
    %v1898 = vmul.f32 %v1891, %v499
    %v1899 = vmul.f32 %v1895, %v505
    %1900 = vset.pattern.permute.xlu0 0
    %1901 = vperm.xlu0 %1900, %v380
    %v1902 = vpop.permute.xlu0 %1901
    %1904 = vset.pattern.permute.xlu0 0
    %1905 = vperm.xlu0 %1904, %v381
    %v1906 = vpop.permute.xlu0 %1905
    %1908 = vset.pattern.permute.xlu0 0
    %1909 = vperm.xlu0 %1908, %v382
    %v1910 = vpop.permute.xlu0 %1909
    %v1912 = vmul.f32 %v1902, %v1278
    %v1913 = vmul.f32 %v1906, %v1284
    %v1914 = vmul.f32 %v1910, %v1290
    %v1915 = vadd.f32 %v1897, %v1912
    %v1916 = vadd.f32 %v1898, %v1913
    %v1917 = vadd.f32 %v1899, %v1914
    %v1918 = vadd.f32 %v1882, %v1915
    %v1919 = vadd.f32 %v1883, %v1916
    %v1920 = vadd.f32 %v1884, %v1917
    %1921 = vset.pattern.permute.xlu0 1
    %1922 = vperm.xlu0 %1921, %v377
    %v1923 = vpop.permute.xlu0 %1922
    %1925 = vset.pattern.permute.xlu0 1
    %1926 = vperm.xlu0 %1925, %v378
    %v1927 = vpop.permute.xlu0 %1926
    %1929 = vset.pattern.permute.xlu0 1
    %1930 = vperm.xlu0 %1929, %v379
    %v1931 = vpop.permute.xlu0 %1930
    %v1933 = vmul.f32 %v1923, %v495
    %v1934 = vmul.f32 %v1927, %v501
    %v1935 = vmul.f32 %v1931, %v507
    %1936 = vset.pattern.permute.xlu0 1
    %1937 = vperm.xlu0 %1936, %v380
    %v1938 = vpop.permute.xlu0 %1937
    %1940 = vset.pattern.permute.xlu0 1
    %1941 = vperm.xlu0 %1940, %v381
    %v1942 = vpop.permute.xlu0 %1941
    %1944 = vset.pattern.permute.xlu0 1
    %1945 = vperm.xlu0 %1944, %v382
    %v1946 = vpop.permute.xlu0 %1945
    %v1948 = vmul.f32 %v1938, %v1280
    %v1949 = vmul.f32 %v1942, %v1286
    %v1950 = vmul.f32 %v1946, %v1292
    %v1951 = vadd.f32 %v1933, %v1948
    %v1952 = vadd.f32 %v1934, %v1949
    %v1953 = vadd.f32 %v1935, %v1950
    %v1954 = vadd.f32 %v1918, %v1951
    %v1955 = vadd.f32 %v1919, %v1952
    %v1956 = vadd.f32 %v1920, %v1953
    %1957 = vset.pattern.permute.xlu0 2
    %1958 = vperm.xlu0 %1957, %v377
    %v1959 = vpop.permute.xlu0 %1958
    %1961 = vset.pattern.permute.xlu0 2
    %1962 = vperm.xlu0 %1961, %v378
    %v1963 = vpop.permute.xlu0 %1962
    %1965 = vset.pattern.permute.xlu0 2
    %1966 = vperm.xlu0 %1965, %v379
    %v1967 = vpop.permute.xlu0 %1966
    %v1969 = vmul.f32 %v1959, %v576
    %v1970 = vmul.f32 %v1963, %v582
    %v1971 = vmul.f32 %v1967, %v588
    %1972 = vset.pattern.permute.xlu0 2
    %1973 = vperm.xlu0 %1972, %v380
    %v1974 = vpop.permute.xlu0 %1973
    %1976 = vset.pattern.permute.xlu0 2
    %1977 = vperm.xlu0 %1976, %v381
    %v1978 = vpop.permute.xlu0 %1977
    %1980 = vset.pattern.permute.xlu0 2
    %1981 = vperm.xlu0 %1980, %v382
    %v1982 = vpop.permute.xlu0 %1981
    %v1984 = vmul.f32 %v1974, %v1361
    %v1985 = vmul.f32 %v1978, %v1367
    %v1986 = vmul.f32 %v1982, %v1373
    %v1987 = vadd.f32 %v1969, %v1984
    %v1988 = vadd.f32 %v1970, %v1985
    %v1989 = vadd.f32 %v1971, %v1986
    %v1990 = vadd.f32 %v1954, %v1987
    %v1991 = vadd.f32 %v1955, %v1988
    %v1992 = vadd.f32 %v1956, %v1989
    %1993 = vset.pattern.permute.xlu0 3
    %1994 = vperm.xlu0 %1993, %v377
    %v1995 = vpop.permute.xlu0 %1994
    %1997 = vset.pattern.permute.xlu0 3
    %1998 = vperm.xlu0 %1997, %v378
    %v1999 = vpop.permute.xlu0 %1998
    %2001 = vset.pattern.permute.xlu0 3
    %2002 = vperm.xlu0 %2001, %v379
    %v2003 = vpop.permute.xlu0 %2002
    %v2005 = vmul.f32 %v1995, %v578
    %v2006 = vmul.f32 %v1999, %v584
    %v2007 = vmul.f32 %v2003, %v590
    %2008 = vset.pattern.permute.xlu0 3
    %2009 = vperm.xlu0 %2008, %v380
    %v2010 = vpop.permute.xlu0 %2009
    %2012 = vset.pattern.permute.xlu0 3
    %2013 = vperm.xlu0 %2012, %v381
    %v2014 = vpop.permute.xlu0 %2013
    %2016 = vset.pattern.permute.xlu0 3
    %2017 = vperm.xlu0 %2016, %v382
    %v2018 = vpop.permute.xlu0 %2017
    %v2020 = vmul.f32 %v2010, %v1363
    %v2021 = vmul.f32 %v2014, %v1369
    %v2022 = vmul.f32 %v2018, %v1375
    %v2023 = vadd.f32 %v2005, %v2020
    %v2024 = vadd.f32 %v2006, %v2021
    %v2025 = vadd.f32 %v2007, %v2022
    %v2026 = vadd.f32 %v1990, %v2023
    %v2027 = vadd.f32 %v1991, %v2024
    %v2028 = vadd.f32 %v1992, %v2025
    %2029 = vset.pattern.permute.xlu0 4
    %2030 = vperm.xlu0 %2029, %v377
    %v2031 = vpop.permute.xlu0 %2030
    %2033 = vset.pattern.permute.xlu0 4
    %2034 = vperm.xlu0 %2033, %v378
    %v2035 = vpop.permute.xlu0 %2034
    %2037 = vset.pattern.permute.xlu0 4
    %2038 = vperm.xlu0 %2037, %v379
    %v2039 = vpop.permute.xlu0 %2038
    %v2041 = vmul.f32 %v2031, %v659
    %v2042 = vmul.f32 %v2035, %v665
    %v2043 = vmul.f32 %v2039, %v671
    %2044 = vset.pattern.permute.xlu0 4
    %2045 = vperm.xlu0 %2044, %v380
    %v2046 = vpop.permute.xlu0 %2045
    %2048 = vset.pattern.permute.xlu0 4
    %2049 = vperm.xlu0 %2048, %v381
    %v2050 = vpop.permute.xlu0 %2049
    %2052 = vset.pattern.permute.xlu0 4
    %2053 = vperm.xlu0 %2052, %v382
    %v2054 = vpop.permute.xlu0 %2053
    %v2056 = vmul.f32 %v2046, %v1444
    %v2057 = vmul.f32 %v2050, %v1450
    %v2058 = vmul.f32 %v2054, %v1456
    %v2059 = vadd.f32 %v2041, %v2056
    %v2060 = vadd.f32 %v2042, %v2057
    %v2061 = vadd.f32 %v2043, %v2058
    %v2062 = vadd.f32 %v2026, %v2059
    %v2063 = vadd.f32 %v2027, %v2060
    %v2064 = vadd.f32 %v2028, %v2061
    %2065 = vset.pattern.permute.xlu0 5
    %2066 = vperm.xlu0 %2065, %v377
    %v2067 = vpop.permute.xlu0 %2066
    %2069 = vset.pattern.permute.xlu0 5
    %2070 = vperm.xlu0 %2069, %v378
    %v2071 = vpop.permute.xlu0 %2070
    %2073 = vset.pattern.permute.xlu0 5
    %2074 = vperm.xlu0 %2073, %v379
    %v2075 = vpop.permute.xlu0 %2074
    %v2077 = vmul.f32 %v2067, %v661
    %v2078 = vmul.f32 %v2071, %v667
    %v2079 = vmul.f32 %v2075, %v673
    %2080 = vset.pattern.permute.xlu0 5
    %2081 = vperm.xlu0 %2080, %v380
    %v2082 = vpop.permute.xlu0 %2081
    %2084 = vset.pattern.permute.xlu0 5
    %2085 = vperm.xlu0 %2084, %v381
    %v2086 = vpop.permute.xlu0 %2085
    %2088 = vset.pattern.permute.xlu0 5
    %2089 = vperm.xlu0 %2088, %v382
    %v2090 = vpop.permute.xlu0 %2089
    %v2092 = vmul.f32 %v2082, %v1446
    %v2093 = vmul.f32 %v2086, %v1452
    %v2094 = vmul.f32 %v2090, %v1458
    %v2095 = vadd.f32 %v2077, %v2092
    %v2096 = vadd.f32 %v2078, %v2093
    %v2097 = vadd.f32 %v2079, %v2094
    %v2098 = vadd.f32 %v2062, %v2095
    %v2099 = vadd.f32 %v2063, %v2096
    %v2100 = vadd.f32 %v2064, %v2097
    %2101 = vset.pattern.permute.xlu0 6
    %2102 = vperm.xlu0 %2101, %v377
    %v2103 = vpop.permute.xlu0 %2102
    %2105 = vset.pattern.permute.xlu0 6
    %2106 = vperm.xlu0 %2105, %v378
    %v2107 = vpop.permute.xlu0 %2106
    %2109 = vset.pattern.permute.xlu0 6
    %2110 = vperm.xlu0 %2109, %v379
    %v2111 = vpop.permute.xlu0 %2110
    %v2113 = vmul.f32 %v2103, %v742
    %v2114 = vmul.f32 %v2107, %v748
    %v2115 = vmul.f32 %v2111, %v754
    %2116 = vset.pattern.permute.xlu0 6
    %2117 = vperm.xlu0 %2116, %v380
    %v2118 = vpop.permute.xlu0 %2117
    %2120 = vset.pattern.permute.xlu0 6
    %2121 = vperm.xlu0 %2120, %v381
    %v2122 = vpop.permute.xlu0 %2121
    %2124 = vset.pattern.permute.xlu0 6
    %2125 = vperm.xlu0 %2124, %v382
    %v2126 = vpop.permute.xlu0 %2125
    %v2128 = vmul.f32 %v2118, %v1527
    %v2129 = vmul.f32 %v2122, %v1533
    %v2130 = vmul.f32 %v2126, %v1539
    %v2131 = vadd.f32 %v2113, %v2128
    %v2132 = vadd.f32 %v2114, %v2129
    %v2133 = vadd.f32 %v2115, %v2130
    %v2134 = vadd.f32 %v2098, %v2131
    %v2135 = vadd.f32 %v2099, %v2132
    %v2136 = vadd.f32 %v2100, %v2133
    %2137 = vset.pattern.permute.xlu0 7
    %2138 = vperm.xlu0 %2137, %v377
    %v2139 = vpop.permute.xlu0 %2138
    %2141 = vset.pattern.permute.xlu0 7
    %2142 = vperm.xlu0 %2141, %v378
    %v2143 = vpop.permute.xlu0 %2142
    %2145 = vset.pattern.permute.xlu0 7
    %2146 = vperm.xlu0 %2145, %v379
    %v2147 = vpop.permute.xlu0 %2146
    %v2149 = vmul.f32 %v2139, %v744
    %v2150 = vmul.f32 %v2143, %v750
    %v2151 = vmul.f32 %v2147, %v756
    %2152 = vset.pattern.permute.xlu0 7
    %2153 = vperm.xlu0 %2152, %v380
    %v2154 = vpop.permute.xlu0 %2153
    %2156 = vset.pattern.permute.xlu0 7
    %2157 = vperm.xlu0 %2156, %v381
    %v2158 = vpop.permute.xlu0 %2157
    %2160 = vset.pattern.permute.xlu0 7
    %2161 = vperm.xlu0 %2160, %v382
    %v2162 = vpop.permute.xlu0 %2161
    %v2164 = vmul.f32 %v2154, %v1529
    %v2165 = vmul.f32 %v2158, %v1535
    %v2166 = vmul.f32 %v2162, %v1541
    %v2167 = vadd.f32 %v2149, %v2164
    %v2168 = vadd.f32 %v2150, %v2165
    %v2169 = vadd.f32 %v2151, %v2166
    %v2170 = vadd.f32 %v2134, %v2167
    %v2171 = vadd.f32 %v2135, %v2168
    %v2172 = vadd.f32 %v2136, %v2169
    %2173 = vset.pattern.permute.xlu0 8
    %2174 = vperm.xlu0 %2173, %v377
    %v2175 = vpop.permute.xlu0 %2174
    %2177 = vset.pattern.permute.xlu0 8
    %2178 = vperm.xlu0 %2177, %v378
    %v2179 = vpop.permute.xlu0 %2178
    %2181 = vset.pattern.permute.xlu0 8
    %2182 = vperm.xlu0 %2181, %v379
    %v2183 = vpop.permute.xlu0 %2182
    %v2185 = vmul.f32 %v2175, %v825
    %v2186 = vmul.f32 %v2179, %v831
    %v2187 = vmul.f32 %v2183, %v837
    %2188 = vset.pattern.permute.xlu0 8
    %2189 = vperm.xlu0 %2188, %v380
    %v2190 = vpop.permute.xlu0 %2189
    %2192 = vset.pattern.permute.xlu0 8
    %2193 = vperm.xlu0 %2192, %v381
    %v2194 = vpop.permute.xlu0 %2193
    %2196 = vset.pattern.permute.xlu0 8
    %2197 = vperm.xlu0 %2196, %v382
    %v2198 = vpop.permute.xlu0 %2197
    %v2200 = vmul.f32 %v2190, %v1610
    %v2201 = vmul.f32 %v2194, %v1616
    %v2202 = vmul.f32 %v2198, %v1622
    %v2203 = vadd.f32 %v2185, %v2200
    %v2204 = vadd.f32 %v2186, %v2201
    %v2205 = vadd.f32 %v2187, %v2202
    %v2206 = vadd.f32 %v2170, %v2203
    %v2207 = vadd.f32 %v2171, %v2204
    %v2208 = vadd.f32 %v2172, %v2205
    %2209 = vset.pattern.permute.xlu0 9
    %2210 = vperm.xlu0 %2209, %v377
    %v2211 = vpop.permute.xlu0 %2210
    %2213 = vset.pattern.permute.xlu0 9
    %2214 = vperm.xlu0 %2213, %v378
    %v2215 = vpop.permute.xlu0 %2214
    %2217 = vset.pattern.permute.xlu0 9
    %2218 = vperm.xlu0 %2217, %v379
    %v2219 = vpop.permute.xlu0 %2218
    %v2221 = vmul.f32 %v2211, %v827
    %v2222 = vmul.f32 %v2215, %v833
    %v2223 = vmul.f32 %v2219, %v839
    %2224 = vset.pattern.permute.xlu0 9
    %2225 = vperm.xlu0 %2224, %v380
    %v2226 = vpop.permute.xlu0 %2225
    %2228 = vset.pattern.permute.xlu0 9
    %2229 = vperm.xlu0 %2228, %v381
    %v2230 = vpop.permute.xlu0 %2229
    %2232 = vset.pattern.permute.xlu0 9
    %2233 = vperm.xlu0 %2232, %v382
    %v2234 = vpop.permute.xlu0 %2233
    %v2236 = vmul.f32 %v2226, %v1612
    %v2237 = vmul.f32 %v2230, %v1618
    %v2238 = vmul.f32 %v2234, %v1624
    %v2239 = vadd.f32 %v2221, %v2236
    %v2240 = vadd.f32 %v2222, %v2237
    %v2241 = vadd.f32 %v2223, %v2238
    %v2242 = vadd.f32 %v2206, %v2239
    %v2243 = vadd.f32 %v2207, %v2240
    %v2244 = vadd.f32 %v2208, %v2241
    %2245 = vset.pattern.permute.xlu0 10
    %2246 = vperm.xlu0 %2245, %v377
    %v2247 = vpop.permute.xlu0 %2246
    %2249 = vset.pattern.permute.xlu0 10
    %2250 = vperm.xlu0 %2249, %v378
    %v2251 = vpop.permute.xlu0 %2250
    %2253 = vset.pattern.permute.xlu0 10
    %2254 = vperm.xlu0 %2253, %v379
    %v2255 = vpop.permute.xlu0 %2254
    %v2257 = vmul.f32 %v2247, %v908
    %v2258 = vmul.f32 %v2251, %v914
    %v2259 = vmul.f32 %v2255, %v920
    %2260 = vset.pattern.permute.xlu0 10
    %2261 = vperm.xlu0 %2260, %v380
    %v2262 = vpop.permute.xlu0 %2261
    %2264 = vset.pattern.permute.xlu0 10
    %2265 = vperm.xlu0 %2264, %v381
    %v2266 = vpop.permute.xlu0 %2265
    %2268 = vset.pattern.permute.xlu0 10
    %2269 = vperm.xlu0 %2268, %v382
    %v2270 = vpop.permute.xlu0 %2269
    %v2272 = vmul.f32 %v2262, %v1693
    %v2273 = vmul.f32 %v2266, %v1699
    %v2274 = vmul.f32 %v2270, %v1705
    %v2275 = vadd.f32 %v2257, %v2272
    %v2276 = vadd.f32 %v2258, %v2273
    %v2277 = vadd.f32 %v2259, %v2274
    %v2278 = vadd.f32 %v2242, %v2275
    %v2279 = vadd.f32 %v2243, %v2276
    %v2280 = vadd.f32 %v2244, %v2277
    %2281 = vset.pattern.permute.xlu0 11
    %2282 = vperm.xlu0 %2281, %v377
    %v2283 = vpop.permute.xlu0 %2282
    %2285 = vset.pattern.permute.xlu0 11
    %2286 = vperm.xlu0 %2285, %v378
    %v2287 = vpop.permute.xlu0 %2286
    %2289 = vset.pattern.permute.xlu0 11
    %2290 = vperm.xlu0 %2289, %v379
    %v2291 = vpop.permute.xlu0 %2290
    %v2293 = vmul.f32 %v2283, %v910
    %v2294 = vmul.f32 %v2287, %v916
    %v2295 = vmul.f32 %v2291, %v922
    %2296 = vset.pattern.permute.xlu0 11
    %2297 = vperm.xlu0 %2296, %v380
    %v2298 = vpop.permute.xlu0 %2297
    %2300 = vset.pattern.permute.xlu0 11
    %2301 = vperm.xlu0 %2300, %v381
    %v2302 = vpop.permute.xlu0 %2301
    %2304 = vset.pattern.permute.xlu0 11
    %2305 = vperm.xlu0 %2304, %v382
    %v2306 = vpop.permute.xlu0 %2305
    %v2308 = vmul.f32 %v2298, %v1695
    %v2309 = vmul.f32 %v2302, %v1701
    %v2310 = vmul.f32 %v2306, %v1707
    %v2311 = vadd.f32 %v2293, %v2308
    %v2312 = vadd.f32 %v2294, %v2309
    %v2313 = vadd.f32 %v2295, %v2310
    %v2314 = vadd.f32 %v2278, %v2311
    %v2315 = vadd.f32 %v2279, %v2312
    %v2316 = vadd.f32 %v2280, %v2313
    %2317 = vset.pattern.permute.xlu0 12
    %2318 = vperm.xlu0 %2317, %v377
    %v2319 = vpop.permute.xlu0 %2318
    %2321 = vset.pattern.permute.xlu0 12
    %2322 = vperm.xlu0 %2321, %v378
    %v2323 = vpop.permute.xlu0 %2322
    %2325 = vset.pattern.permute.xlu0 12
    %2326 = vperm.xlu0 %2325, %v379
    %v2327 = vpop.permute.xlu0 %2326
    %v2329 = vmul.f32 %v2319, %v991
    %v2330 = vmul.f32 %v2323, %v997
    %v2331 = vmul.f32 %v2327, %v1003
    %2332 = vset.pattern.permute.xlu0 12
    %2333 = vperm.xlu0 %2332, %v380
    %v2334 = vpop.permute.xlu0 %2333
    %2336 = vset.pattern.permute.xlu0 12
    %2337 = vperm.xlu0 %2336, %v381
    %v2338 = vpop.permute.xlu0 %2337
    %2340 = vset.pattern.permute.xlu0 12
    %2341 = vperm.xlu0 %2340, %v382
    %v2342 = vpop.permute.xlu0 %2341
    %v2344 = vmul.f32 %v2334, %v1776
    %v2345 = vmul.f32 %v2338, %v1782
    %v2346 = vmul.f32 %v2342, %v1788
    %v2347 = vadd.f32 %v2329, %v2344
    %v2348 = vadd.f32 %v2330, %v2345
    %v2349 = vadd.f32 %v2331, %v2346
    %v2350 = vadd.f32 %v2314, %v2347
    %v2351 = vadd.f32 %v2315, %v2348
    %v2352 = vadd.f32 %v2316, %v2349
    %2353 = vset.pattern.permute.xlu0 13
    %2354 = vperm.xlu0 %2353, %v377
    %v2355 = vpop.permute.xlu0 %2354
    %2357 = vset.pattern.permute.xlu0 13
    %2358 = vperm.xlu0 %2357, %v378
    %v2359 = vpop.permute.xlu0 %2358
    %2361 = vset.pattern.permute.xlu0 13
    %2362 = vperm.xlu0 %2361, %v379
    %v2363 = vpop.permute.xlu0 %2362
    %v2365 = vmul.f32 %v2355, %v993
    %v2366 = vmul.f32 %v2359, %v999
    %v2367 = vmul.f32 %v2363, %v1005
    %2368 = vset.pattern.permute.xlu0 13
    %2369 = vperm.xlu0 %2368, %v380
    %v2370 = vpop.permute.xlu0 %2369
    %2372 = vset.pattern.permute.xlu0 13
    %2373 = vperm.xlu0 %2372, %v381
    %v2374 = vpop.permute.xlu0 %2373
    %2376 = vset.pattern.permute.xlu0 13
    %2377 = vperm.xlu0 %2376, %v382
    %v2378 = vpop.permute.xlu0 %2377
    %v2380 = vmul.f32 %v2370, %v1778
    %v2381 = vmul.f32 %v2374, %v1784
    %v2382 = vmul.f32 %v2378, %v1790
    %v2383 = vadd.f32 %v2365, %v2380
    %v2384 = vadd.f32 %v2366, %v2381
    %v2385 = vadd.f32 %v2367, %v2382
    %v2386 = vadd.f32 %v2350, %v2383
    %v2387 = vadd.f32 %v2351, %v2384
    %v2388 = vadd.f32 %v2352, %v2385
    %2389 = vset.pattern.permute.xlu0 14
    %2390 = vperm.xlu0 %2389, %v377
    %v2391 = vpop.permute.xlu0 %2390
    %2393 = vset.pattern.permute.xlu0 14
    %2394 = vperm.xlu0 %2393, %v378
    %v2395 = vpop.permute.xlu0 %2394
    %2397 = vset.pattern.permute.xlu0 14
    %2398 = vperm.xlu0 %2397, %v379
    %v2399 = vpop.permute.xlu0 %2398
    %v2401 = vmul.f32 %v2391, %v1074
    %v2402 = vmul.f32 %v2395, %v1080
    %v2403 = vmul.f32 %v2399, %v1086
    %2404 = vset.pattern.permute.xlu0 14
    %2405 = vperm.xlu0 %2404, %v380
    %v2406 = vpop.permute.xlu0 %2405
    %2408 = vset.pattern.permute.xlu0 14
    %2409 = vperm.xlu0 %2408, %v381
    %v2410 = vpop.permute.xlu0 %2409
    %2412 = vset.pattern.permute.xlu0 14
    %2413 = vperm.xlu0 %2412, %v382
    %v2414 = vpop.permute.xlu0 %2413
    %v2416 = vmul.f32 %v2406, %v1859
    %v2417 = vmul.f32 %v2410, %v1865
    %v2418 = vmul.f32 %v2414, %v1871
    %v2419 = vadd.f32 %v2401, %v2416
    %v2420 = vadd.f32 %v2402, %v2417
    %v2421 = vadd.f32 %v2403, %v2418
    %v2422 = vadd.f32 %v2386, %v2419
    %v2423 = vadd.f32 %v2387, %v2420
    %v2424 = vadd.f32 %v2388, %v2421
    %2425 = vset.pattern.permute.xlu0 15
    %2426 = vperm.xlu0 %2425, %v377
    %v2427 = vpop.permute.xlu0 %2426
    %2429 = vset.pattern.permute.xlu0 15
    %2430 = vperm.xlu0 %2429, %v378
    %v2431 = vpop.permute.xlu0 %2430
    %2433 = vset.pattern.permute.xlu0 15
    %2434 = vperm.xlu0 %2433, %v379
    %v2435 = vpop.permute.xlu0 %2434
    %v2437 = vmul.f32 %v2427, %v1076
    %v2438 = vmul.f32 %v2431, %v1082
    %v2439 = vmul.f32 %v2435, %v1088
    %2440 = vset.pattern.permute.xlu0 15
    %2441 = vperm.xlu0 %2440, %v380
    %v2442 = vpop.permute.xlu0 %2441
    %2444 = vset.pattern.permute.xlu0 15
    %2445 = vperm.xlu0 %2444, %v381
    %v2446 = vpop.permute.xlu0 %2445
    %2448 = vset.pattern.permute.xlu0 15
    %2449 = vperm.xlu0 %2448, %v382
    %v2450 = vpop.permute.xlu0 %2449
    %v2452 = vmul.f32 %v2442, %v1861
    %v2453 = vmul.f32 %v2446, %v1867
    %v2454 = vmul.f32 %v2450, %v1873
    %v2455 = vadd.f32 %v2437, %v2452
    %v2456 = vadd.f32 %v2438, %v2453
    %v2457 = vadd.f32 %v2439, %v2454
    %v2458 = vadd.f32 %v2422, %v2455
    %v2459 = vadd.f32 %v2423, %v2456
    %v2460 = vadd.f32 %v2424, %v2457
    %v2461 = vmax.f32 %v2458, 0.0
    %v2462 = vmax.f32 %v2459, 0.0
    %v2463 = vmax.f32 %v2460, 0.0
    %v2464 = vld [vmem:[%s9] sm:$0x1]
    %v2466 = vlaneseq
    %v2467 = vshrl.u32 %v2466, 7
    %v2468 = vsub.s32 0, %v2467
    %v2469 = vrot.slane %v2464, %v2468
    %v2471 = vmul.f32 %v2461, %v2469
    %v2472 = vmul.f32 %v2462, %v2469
    %v2473 = vmul.f32 %v2463, %v2469
    %2474 = vadd.xlane.f32.xlu0 %v2471
    %v2475 = vpop.xlane.xlu0 %2474
    %2476 = vadd.xlane.f32.xlu0 %v2472
    %v2477 = vpop.xlane.xlu0 %2476
    %2478 = vadd.xlane.f32.xlu0 %v2473
    %v2479 = vpop.xlane.xlu0 %2478
    %v2480 = vld [vmem:[#allocation2] sm:$0x1]
    %v2482 = vlaneseq
    %v2483 = vshrl.u32 %v2482, 7
    %v2484 = vsub.s32 0, %v2483
    %v2485 = vrot.slane %v2480, %v2484
    %v2487 = vadd.f32 %v2475, %v2485
    %v2488 = vadd.f32 %v2477, %v2485
    %v2489 = vadd.f32 %v2479, %v2485
    %vm2490 = vcmask 7168
    %2491 = vst.msk [vmem:[%s11] sm:$0xff] %vm2490, %v2487
    %2492 = vst.msk [vmem:[%s11 + $0x8] sm:$0xff] %vm2490, %v2488
    %2493 = vst.msk [vmem:[%s11 + $0x10] sm:$0xff] %vm2490, %v2489
    // Predicated region
    $region58: #{tpu_custom_call.1} parent=1 // pred_check
      _
    $region59: #{tpu_custom_call.1} parent=1 // pred_check_branch
      %2495 = sbr.rel (0) target = $region61
    $region60: #{tpu_custom_call.1} parent=1 // pred_region
      _
    $region61: #{tpu_custom_call.1} parent=1 // pred_fallthru
      _
    // Predicated region
    $region62: #{tpu_custom_call.1} parent=1 // pred_check
      _
    $region63: #{tpu_custom_call.1} parent=1 // pred_check_branch
      %2497 = sbr.rel (0) target = $region65
    $region64: #{tpu_custom_call.1} parent=1 // pred_region
      _
    $region65: #{tpu_custom_call.1} parent=1 // pred_fallthru
      _
    %2498 = vsyncpa [#allocation4], 1
    %2499 = vsyncpa [#allocation6], 1

</llo_original>
